<compile_context>
chip_gen: v6e
topology: v6e:2x2x1
jax: 0.10.0
libtpu: 0.0.40
codegen_flags: <defaults>
</compile_context>

<pallas_src>
import jax
import jax.numpy as jnp
from jax.experimental import pallas as pl
from jax.experimental.pallas import tpu as pltpu

_LANE = 128


def _round_up(n, m):
    return ((n + m - 1) // m) * m


def _dtype_bytes(dtype):
    return jnp.finfo(dtype).bits // 8


def _make_vae_kernel(emit_diagnostics, compute_dtype):
    def kernel(x_ref, u_ref, wenc_ref, benc_ref, wdec_ref, bdec_ref,
               result_ref, *diag_refs):
        tb, s, tp = u_ref.shape
        rows = tb * s

        # ---- fused encoder (f32): one matmul -> [tb, 2*Tp] = [mu | log_sigma].
        # Tp is a multiple of 128, so the split below is lane-tile aligned (free).
        enc = jnp.dot(x_ref[...], wenc_ref[...],
                      preferred_element_type=jnp.float32) + benc_ref[...]
        mu = enc[:, :tp]                                          # [tb, Tp]
        sigma = jnp.exp(enc[:, tp:])                              # [tb, Tp]

        # ---- q.sample(u) with the 4-sigma clip folded onto the noise:
        # sigma > 0  =>  clamp(mu + sigma*u, mu +/- 4s) == mu + sigma*clip(u, -4, 4).
        # mu / sigma broadcast across the S sample rows implicitly (VPU sublane bcast).
        u_c = jnp.clip(u_ref[...].astype(jnp.float32), -4.0, 4.0)  # [tb, S, Tp]
        theta = mu[:, None, :] + sigma[:, None, :] * u_c           # [tb, S, Tp]
        # Only the matmul operand gets reshaped; the lane dim (Tp) is unchanged.
        theta2 = theta.reshape(rows, tp)

        # ---- decoder: linear readout, bf16 MXU path, f32 accumulation.
        result_ref[...] = (jnp.dot(theta2.astype(compute_dtype), wdec_ref[...],
                                   preferred_element_type=jnp.float32)
                           + bdec_ref[...])

        if emit_diagnostics:
            theta_ref, musig_ref = diag_refs
            theta_ref[...] = theta2
            # One lane-dense, full-width store of [mu | sigma].
            musig_ref[...] = jnp.concatenate([mu, sigma], axis=-1)

    return kernel


def _footprint_bytes(tb, S, d_in, Tp, Dp, cdt_bytes, diagnostics,
                     weight_buffers=2):
    """Conservative per-kernel VMEM estimate: double-buffered streamed blocks,
    resident weights and the in-kernel intermediates (enc, u_c, theta, casts)."""
    f32 = 4
    stream = 2 * (tb * d_in * f32                       # x
                  + tb * S * Tp * cdt_bytes             # u
                  + tb * S * Dp * f32)                  # result
    if diagnostics:
        stream += 2 * (tb * S * Tp * f32                # theta
                       + tb * 2 * Tp * f32)             # [mu | sigma]
    weights = weight_buffers * (d_in * 2 * Tp * f32 + 2 * Tp * f32
                                + Tp * Dp * cdt_bytes + Dp * f32)
    interm = (tb * 2 * Tp * f32                         # enc
              + 2 * tb * Tp * f32                       # mu, sigma
              + tb * S * Tp * (2 * f32 + cdt_bytes)     # u_c, theta, theta cast
              + tb * S * Dp * f32)                      # matmul accumulator
    return stream + weights + interm


def _vmem_capacity_bytes():
    try:
        info = pltpu.get_tpu_info()
        cap = getattr(info, "vmem_capacity_bytes", None)
        if cap:
            return int(cap)
    except Exception:
        pass
    return 64 << 20       # conservative default (v7x per-TensorCore VMEM)


def _pick_batch_tile(B, S, d_in, Tp, Dp, cdt_bytes, diagnostics, budget):
    """Largest batch tile dividing B (multiple of 8 sublanes for the f32 2-D
    blocks, or == B) whose conservative footprint fits the VMEM budget.
    Prefers >= 2 grid steps so v7x can split the batch across both TensorCores
    (costs ~0.35us of per-step overhead on single-TC v5e/v6e)."""
    legal = [t for t in range(1, B + 1)
             if B % t == 0 and (t % 8 == 0 or t == B)]
    multi = [t for t in legal if t <= B // 2] or legal
    fitting = [t for t in multi
               if _footprint_bytes(t, S, d_in, Tp, Dp, cdt_bytes, diagnostics)
               <= budget]
    return max(fitting) if fitting else min(multi)


def base_vae_forward(x, u, params, *, tb=None, return_diagnostics=True,
                     compute_dtype=jnp.bfloat16):
    """Fused BaseVAE.forward.

    Returns (result [B,S,Dout], conditioned_theta [B,S,T], (mu, sigma)) when
    return_diagnostics=True, else just result.
    """
    f32 = jnp.float32
    B, d_in = x.shape
    _, S, T = u.shape
    d_out = params["w_dec"].shape[1]

    Tp = _round_up(T, _LANE)        # lane-dense latent width
    Dp = _round_up(d_out, _LANE)    # lane-dense output width
    cdt_bytes = _dtype_bytes(compute_dtype)

    def padcols(a, n):
        return jnp.pad(a, ((0, 0), (0, n - a.shape[1])))

    def padrows(a, n):
        return jnp.pad(a, ((0, n - a.shape[0]), (0, 0)))

    # Fused, lane-padded encoder weight/bias: [d_in, 2*Tp] = [W_mu|0 | W_ls|0].
    # Each half starts on a 128-lane boundary so the in-kernel split is free.
    w_enc = jnp.concatenate([padcols(params["w_mu"].astype(f32), Tp),
                             padcols(params["w_ls"].astype(f32), Tp)], axis=1)
    b_enc = jnp.concatenate(
        [padcols(params["b_mu"].astype(f32).reshape(1, -1), Tp),
         padcols(params["b_ls"].astype(f32).reshape(1, -1), Tp)], axis=1)
    # Lane-padded decoder weight in the MXU compute dtype; padded theta lanes hit
    # zero rows and padded output lanes are zero columns (padding stays zero).
    w_dec = padcols(padrows(params["w_dec"].astype(f32), Tp), Dp).astype(compute_dtype)
    b_dec = padcols(params["b_dec"].astype(f32).reshape(1, -1), Dp)

    # Dominant streamed input: lane-padded noise; HBM traffic halved in bf16.
    u_p = jnp.pad(u, ((0, 0), (0, 0), (0, Tp - T))).astype(compute_dtype)
    x_f = x.astype(f32)

    # --- generation-aware VMEM budgeting / batch-tile choice ------------------
    cap = _vmem_capacity_bytes()
    budget = min(int(0.55 * cap), 72 << 20)
    if tb is None:
        tb = _pick_batch_tile(B, S, d_in, Tp, Dp, cdt_bytes,
                              return_diagnostics, budget)
    assert B % tb == 0
    grid = (B // tb,)
    footprint = _footprint_bytes(tb, S, d_in, Tp, Dp, cdt_bytes,
                                 return_diagnostics)
    vmem_limit = int(min(int(0.85 * cap), max(footprint + (8 << 20), 24 << 20)))

    # --- cost estimate so XLA schedules around this small kernel --------------
    flops = (2 * B * d_in * 2 * Tp           # fused encoder matmul
             + 2 * B * S * Tp * Dp           # decoder matmul
             + 4 * B * S * Tp)               # clip / scale / shift
    bytes_accessed = (x_f.size * 4 + u_p.size * cdt_bytes
                      + w_enc.size * 4 + b_enc.size * 4
                      + w_dec.size * cdt_bytes + b_dec.size * 4
                      + B * S * Dp * 4
                      + (B * S * Tp * 4 + B * 2 * Tp * 4
                         if return_diagnostics else 0))
    cost = pl.CostEstimate(flops=flops, transcendentals=B * Tp,
                           bytes_accessed=bytes_accessed)

    def _weight_spec(shape, single_buffer):
        if single_buffer:
            # Constant index_map -> never re-fetched; one VMEM buffer is enough.
            return pl.BlockSpec(shape, lambda i: (0, 0),
                                pipeline_mode=pl.Buffered(1))
        return pl.BlockSpec(shape, lambda i: (0, 0))

    def build_call(single_buffer_weights):
        in_specs = [
            pl.BlockSpec((tb, d_in), lambda i: (i, 0)),          # x (batch tile)
            pl.BlockSpec((tb, S, Tp), lambda i: (i, 0, 0)),      # u (3-D, no reshape)
            _weight_spec((d_in, 2 * Tp), single_buffer_weights),  # fused encoder W
            _weight_spec((1, 2 * Tp), single_buffer_weights),     # fused encoder b
            _weight_spec((Tp, Dp), single_buffer_weights),        # decoder W
            _weight_spec((1, Dp), single_buffer_weights),         # decoder b
        ]
        out_shape = [jax.ShapeDtypeStruct((B * S, Dp), f32)]      # result (lane-dense)
        out_specs = [pl.BlockSpec((tb * S, Dp), lambda i: (i, 0))]
        if return_diagnostics:
            out_shape += [jax.ShapeDtypeStruct((B * S, Tp), f32),  # clipped theta
                          jax.ShapeDtypeStruct((B, 2 * Tp), f32)]  # [mu | sigma]
            out_specs += [pl.BlockSpec((tb * S, Tp), lambda i: (i, 0)),
                          pl.BlockSpec((tb, 2 * Tp), lambda i: (i, 0))]
        return pl.pallas_call(
            _make_vae_kernel(return_diagnostics, compute_dtype),
            grid=grid,
            in_specs=in_specs,
            out_specs=tuple(out_specs),
            out_shape=tuple(out_shape),
            compiler_params=pltpu.CompilerParams(
                dimension_semantics=("parallel",),
                vmem_limit_bytes=vmem_limit),
            cost_estimate=cost,
        )

    args = (x_f, u_p, w_enc, b_enc, w_dec, b_dec)
    try:
        outs = build_call(single_buffer_weights=True)(*args)
        outs = jax.block_until_ready(outs)
    except Exception:
        # Older jaxlibs may reject pipeline_mode=pl.Buffered(1); default buffering
        # only costs one extra (tiny) resident copy of the weights.
        outs = build_call(single_buffer_weights=False)(*args)

    if not isinstance(outs, (tuple, list)):
        outs = (outs,)

    result = outs[0][:, :d_out].reshape(B, S, d_out)
    if not return_diagnostics:
        return result
    theta = outs[1][:, :T].reshape(B, S, T)
    musig = outs[2]
    mu, sigma = musig[:, :T], musig[:, Tp:Tp + T]
    return result, theta, (mu, sigma)


def _reference_forward(x, u, params):
    mu = x @ params["w_mu"] + params["b_mu"]
    sigma = jnp.exp(x @ params["w_ls"] + params["b_ls"])
    theta = mu[:, None, :] + sigma[:, None, :] * u
    clipped = jnp.clip(theta, (mu - 4 * sigma)[:, None, :],
                       (mu + 4 * sigma)[:, None, :])
    result = clipped @ params["w_dec"] + params["b_dec"]
    return result, clipped, mu, sigma


if __name__ == "__main__":
    # Small shapes consistent with the forward semantics.
    B, S = 16, 8            # n_batch (len(data.inputs)), n_samples
    D_IN, N_THETA, D_OUT = 32, 16, 32

    key = jax.random.PRNGKey(0)
    kx, ku, k1, k2, k3, k4, k5, k6 = jax.random.split(key, 8)

    x = jax.random.normal(kx, (B, D_IN), dtype=jnp.float32)          # data.inputs
    u = jax.random.normal(ku, (B, S, N_THETA), dtype=jnp.float32)    # sample_u(B, S)

    params = {
        "w_mu":  0.1 * jax.random.normal(k1, (D_IN, N_THETA), dtype=jnp.float32),
        "b_mu":  0.1 * jax.random.normal(k2, (1, N_THETA), dtype=jnp.float32),
        "w_ls":  0.1 * jax.random.normal(k3, (D_IN, N_THETA), dtype=jnp.float32),
        "b_ls":  0.1 * jax.random.normal(k4, (1, N_THETA), dtype=jnp.float32),
        "w_dec": 0.1 * jax.random.normal(k5, (N_THETA, D_OUT), dtype=jnp.float32),
        "b_dec": 0.1 * jax.random.normal(k6, (1, D_OUT), dtype=jnp.float32),
    }

    r_ref, t_ref, mu_r, sig_r = _reference_forward(x, u, params)

    # 1) Strict correctness: f32 compute path against the f32 reference.
    res32, th32, (mu32, sig32) = jax.block_until_ready(
        base_vae_forward(x, u, params, compute_dtype=jnp.float32))
    assert jnp.allclose(res32, r_ref, atol=1e-5, rtol=1e-5)
    assert jnp.allclose(th32, t_ref, atol=1e-5, rtol=1e-5)
    assert jnp.allclose(mu32, mu_r, atol=1e-5, rtol=1e-5)
    assert jnp.allclose(sig32, sig_r, atol=1e-5, rtol=1e-5)

    # 2) Default bf16-MXU path: encoder stays f32, decoder/noise are bf16.
    u_bf = u.astype(jnp.bfloat16).astype(jnp.float32)
    r_ref_bf, t_ref_bf, _, _ = _reference_forward(x, u_bf, params)
    res, th, (mu, sig) = jax.block_until_ready(
        base_vae_forward(x, u, params, tb=8))
    assert jnp.allclose(mu, mu_r, atol=1e-5, rtol=1e-5)
    assert jnp.allclose(sig, sig_r, atol=1e-5, rtol=1e-5)
    assert jnp.allclose(th, t_ref_bf, atol=1e-3, rtol=1e-3)
    assert jnp.allclose(res, r_ref_bf, atol=5e-2, rtol=5e-2)

    # 3) Result-only path (drops theta / (mu, sigma) HBM writeback).
    res_only = jax.block_until_ready(
        base_vae_forward(x, u, params, return_diagnostics=False))
    assert jnp.allclose(res_only, r_ref_bf, atol=5e-2, rtol=5e-2)

    print("KERNEL_OK")
</pallas_src>

<mosaic_0001>
module attributes {stable_mosaic.version = 11 : i64} {
  func.func @kernel(%arg0: i32, %arg1: memref<8x32xf32, #tpu.memory_space<vmem>>, %arg2: memref<8x8x128xf32, #tpu.memory_space<vmem>>, %arg3: memref<32x256xf32, #tpu.memory_space<vmem>>, %arg4: memref<1x256xf32, #tpu.memory_space<vmem>>, %arg5: memref<128x128xf32, #tpu.memory_space<vmem>>, %arg6: memref<1x128xf32, #tpu.memory_space<vmem>>, %arg7: memref<64x128xf32, #tpu.memory_space<vmem>>, %arg8: memref<64x128xf32, #tpu.memory_space<vmem>>, %arg9: memref<8x256xf32, #tpu.memory_space<vmem>>) attributes {dimension_semantics = [#tpu.dimension_semantics<parallel>], iteration_bounds = array<i64: 2>, scalar_prefetch = 0 : i64, scratch_operands = 0 : i64, tpu.core_type = #tpu.core_type<tc>, window_params = [{transform_indices = @transform_0, window_bounds = array<i64: 8, 32>}, {transform_indices = @transform_1, window_bounds = array<i64: 8, 8, 128>}, {pipeline_mode = #tpu.pipeline_mode<synchronous>, transform_indices = @transform_2, window_bounds = array<i64: 32, 256>}, {pipeline_mode = #tpu.pipeline_mode<synchronous>, transform_indices = @transform_3, window_bounds = array<i64: 1, 256>}, {pipeline_mode = #tpu.pipeline_mode<synchronous>, transform_indices = @transform_4, window_bounds = array<i64: 128, 128>}, {pipeline_mode = #tpu.pipeline_mode<synchronous>, transform_indices = @transform_5, window_bounds = array<i64: 1, 128>}, {transform_indices = @transform_6, window_bounds = array<i64: 64, 128>}, {transform_indices = @transform_7, window_bounds = array<i64: 64, 128>}, {transform_indices = @transform_8, window_bounds = array<i64: 8, 256>}]} {
    %c0 = arith.constant 0 : index
    %c0_0 = arith.constant 0 : index
    %0 = vector.load %arg1[%c0, %c0_0] : memref<8x32xf32, #tpu.memory_space<vmem>>, vector<8x32xf32>
    %c0_1 = arith.constant 0 : index
    %c0_2 = arith.constant 0 : index
    %1 = vector.load %arg3[%c0_1, %c0_2] : memref<32x256xf32, #tpu.memory_space<vmem>>, vector<32x256xf32>
    %cst = arith.constant dense<0.000000e+00> : vector<8x256xf32>
    %2 = tpu.matmul %0, %1, %cst {dimension_numbers = #tpu.dot_dimension_numbers<[1], [0], [0], [1], [0, 0, 1, 1], [], []>} : vector<8x32xf32>, vector<32x256xf32>, vector<8x256xf32> -> vector<8x256xf32>
    %c0_3 = arith.constant 0 : index
    %c0_4 = arith.constant 0 : index
    %3 = vector.load %arg4[%c0_3, %c0_4] : memref<1x256xf32, #tpu.memory_space<vmem>>, vector<1x256xf32>
    %4 = vector.broadcast %3 : vector<1x256xf32> to vector<8x256xf32>
    %5 = arith.addf %2, %4 : vector<8x256xf32>
    %6 = vector.extract_strided_slice %5 {offsets = [0, 0], sizes = [8, 128], strides = [1, 1]} : vector<8x256xf32> to vector<8x128xf32>
    %7 = vector.extract_strided_slice %5 {offsets = [0, 128], sizes = [8, 128], strides = [1, 1]} : vector<8x256xf32> to vector<8x128xf32>
    %8 = math.exp %7 : vector<8x128xf32>
    %c0_5 = arith.constant 0 : index
    %c0_6 = arith.constant 0 : index
    %c0_7 = arith.constant 0 : index
    %9 = vector.load %arg2[%c0_5, %c0_6, %c0_7] : memref<8x8x128xf32, #tpu.memory_space<vmem>>, vector<8x8x128xf32>
    %cst_8 = arith.constant -4.000000e+00 : f32
    %cst_9 = arith.constant 4.000000e+00 : f32
    %10 = vector.broadcast %cst_8 : f32 to vector<8x8x128xf32>
    %11 = arith.maximumf %10, %9 : vector<8x8x128xf32>
    %12 = vector.broadcast %cst_9 : f32 to vector<8x8x128xf32>
    %13 = arith.minimumf %12, %11 : vector<8x8x128xf32>
    %14 = vector.shape_cast %6 : vector<8x128xf32> to vector<8x1x128xf32>
    %15 = vector.shape_cast %8 : vector<8x128xf32> to vector<8x1x128xf32>
    %16 = vector.broadcast %15 : vector<8x1x128xf32> to vector<8x8x128xf32>
    %17 = arith.mulf %16, %13 : vector<8x8x128xf32>
    %18 = vector.broadcast %14 : vector<8x1x128xf32> to vector<8x8x128xf32>
    %19 = arith.addf %18, %17 : vector<8x8x128xf32>
    %20 = vector.shape_cast %19 : vector<8x8x128xf32> to vector<64x128xf32>
    %c0_10 = arith.constant 0 : index
    %c0_11 = arith.constant 0 : index
    %21 = vector.load %arg5[%c0_10, %c0_11] : memref<128x128xf32, #tpu.memory_space<vmem>>, vector<128x128xf32>
    %cst_12 = arith.constant dense<0.000000e+00> : vector<64x128xf32>
    %22 = tpu.matmul %20, %21, %cst_12 {dimension_numbers = #tpu.dot_dimension_numbers<[1], [0], [0], [1], [0, 0, 1, 1], [], []>} : vector<64x128xf32>, vector<128x128xf32>, vector<64x128xf32> -> vector<64x128xf32>
    %c0_13 = arith.constant 0 : index
    %c0_14 = arith.constant 0 : index
    %23 = vector.load %arg6[%c0_13, %c0_14] : memref<1x128xf32, #tpu.memory_space<vmem>>, vector<1x128xf32>
    %24 = vector.broadcast %23 : vector<1x128xf32> to vector<64x128xf32>
    %25 = arith.addf %22, %24 : vector<64x128xf32>
    %c0_15 = arith.constant 0 : index
    %c0_16 = arith.constant 0 : index
    %26 = vector.load %arg7[%c0_15, %c0_16] : memref<64x128xf32, #tpu.memory_space<vmem>>, vector<64x128xf32>
    tpu.vector_store %arg7[%c0_15, %c0_16], %25 {strides = array<i32>} : memref<64x128xf32, #tpu.memory_space<vmem>>, vector<64x128xf32>,
    %c0_17 = arith.constant 0 : index
    %c0_18 = arith.constant 0 : index
    %27 = vector.load %arg8[%c0_17, %c0_18] : memref<64x128xf32, #tpu.memory_space<vmem>>, vector<64x128xf32>
    tpu.vector_store %arg8[%c0_17, %c0_18], %20 {strides = array<i32>} : memref<64x128xf32, #tpu.memory_space<vmem>>, vector<64x128xf32>,
    %28 = tpu.concatenate %6, %8 in 1 : vector<8x128xf32>, vector<8x128xf32> -> vector<8x256xf32>
    %c0_19 = arith.constant 0 : index
    %c0_20 = arith.constant 0 : index
    %29 = vector.load %arg9[%c0_19, %c0_20] : memref<8x256xf32, #tpu.memory_space<vmem>>, vector<8x256xf32>
    tpu.vector_store %arg9[%c0_19, %c0_20], %28 {strides = array<i32>} : memref<8x256xf32, #tpu.memory_space<vmem>>, vector<8x256xf32>,
    return
  }
  func.func @transform_0(%arg0: i32) -> (i32, i32) {
    %c0_i32 = arith.constant 0 : i32
    %c0_i32_0 = arith.constant 0 : i32
    return %arg0, %c0_i32 : i32, i32
  }
  func.func @transform_1(%arg0: i32) -> (i32, i32, i32) {
    %c0_i32 = arith.constant 0 : i32
    %c0_i32_0 = arith.constant 0 : i32
    %c0_i32_1 = arith.constant 0 : i32
    return %arg0, %c0_i32, %c0_i32_0 : i32, i32, i32
  }
  func.func @transform_2(%arg0: i32) -> (i32, i32) {
    %c0_i32 = arith.constant 0 : i32
    %c0_i32_0 = arith.constant 0 : i32
    %c0_i32_1 = arith.constant 0 : i32
    return %c0_i32, %c0_i32_0 : i32, i32
  }
  func.func @transform_3(%arg0: i32) -> (i32, i32) {
    %c0_i32 = arith.constant 0 : i32
    %c0_i32_0 = arith.constant 0 : i32
    %c0_i32_1 = arith.constant 0 : i32
    return %c0_i32, %c0_i32_0 : i32, i32
  }
  func.func @transform_4(%arg0: i32) -> (i32, i32) {
    %c0_i32 = arith.constant 0 : i32
    %c0_i32_0 = arith.constant 0 : i32
    %c0_i32_1 = arith.constant 0 : i32
    return %c0_i32, %c0_i32_0 : i32, i32
  }
  func.func @transform_5(%arg0: i32) -> (i32, i32) {
    %c0_i32 = arith.constant 0 : i32
    %c0_i32_0 = arith.constant 0 : i32
    %c0_i32_1 = arith.constant 0 : i32
    return %c0_i32, %c0_i32_0 : i32, i32
  }
  func.func @transform_6(%arg0: i32) -> (i32, i32) {
    %c0_i32 = arith.constant 0 : i32
    %c0_i32_0 = arith.constant 0 : i32
    return %arg0, %c0_i32 : i32, i32
  }
  func.func @transform_7(%arg0: i32) -> (i32, i32) {
    %c0_i32 = arith.constant 0 : i32
    %c0_i32_0 = arith.constant 0 : i32
    return %arg0, %c0_i32 : i32, i32
  }
  func.func @transform_8(%arg0: i32) -> (i32, i32) {
    %c0_i32 = arith.constant 0 : i32
    %c0_i32_0 = arith.constant 0 : i32
    return %arg0, %c0_i32 : i32, i32
  }
}

module attributes {stable_mosaic.version = 11 : i64} {
  func.func @kernel(%arg0: i32, %arg1: memref<8x32xf32, #tpu.memory_space<vmem>>, %arg2: memref<8x8x128xf32, #tpu.memory_space<vmem>>, %arg3: memref<32x256xf32, #tpu.memory_space<vmem>>, %arg4: memref<1x256xf32, #tpu.memory_space<vmem>>, %arg5: memref<128x128xf32, #tpu.memory_space<vmem>>, %arg6: memref<1x128xf32, #tpu.memory_space<vmem>>, %arg7: memref<64x128xf32, #tpu.memory_space<vmem>>, %arg8: memref<64x128xf32, #tpu.memory_space<vmem>>, %arg9: memref<8x256xf32, #tpu.memory_space<vmem>>) attributes {dimension_semantics = [#tpu.dimension_semantics<parallel>], iteration_bounds = array<i64: 2>, scalar_prefetch = 0 : i64, scratch_operands = 0 : i64, tpu.core_type = #tpu.core_type<tc>, window_params = [{transform_indices = @transform_0, window_bounds = array<i64: 8, 32>}, {transform_indices = @transform_1, window_bounds = array<i64: 8, 8, 128>}, {pipeline_mode = #tpu.pipeline_mode<synchronous>, transform_indices = @transform_2, window_bounds = array<i64: 32, 256>}, {pipeline_mode = #tpu.pipeline_mode<synchronous>, transform_indices = @transform_3, window_bounds = array<i64: 1, 256>}, {pipeline_mode = #tpu.pipeline_mode<synchronous>, transform_indices = @transform_4, window_bounds = array<i64: 128, 128>}, {pipeline_mode = #tpu.pipeline_mode<synchronous>, transform_indices = @transform_5, window_bounds = array<i64: 1, 128>}, {transform_indices = @transform_6, window_bounds = array<i64: 64, 128>}, {transform_indices = @transform_7, window_bounds = array<i64: 64, 128>}, {transform_indices = @transform_8, window_bounds = array<i64: 8, 256>}]} {
    %c0 = arith.constant 0 : index
    %c0_0 = arith.constant 0 : index
    %0 = vector.load %arg1[%c0, %c0_0] : memref<8x32xf32, #tpu.memory_space<vmem>>, vector<8x32xf32>
    %c0_1 = arith.constant 0 : index
    %c0_2 = arith.constant 0 : index
    %1 = vector.load %arg3[%c0_1, %c0_2] : memref<32x256xf32, #tpu.memory_space<vmem>>, vector<32x256xf32>
    %cst = arith.constant dense<0.000000e+00> : vector<8x256xf32>
    %2 = tpu.matmul %0, %1, %cst {dimension_numbers = #tpu.dot_dimension_numbers<[1], [0], [0], [1], [0, 0, 1, 1], [], []>} : vector<8x32xf32>, vector<32x256xf32>, vector<8x256xf32> -> vector<8x256xf32>
    %c0_3 = arith.constant 0 : index
    %c0_4 = arith.constant 0 : index
    %3 = vector.load %arg4[%c0_3, %c0_4] : memref<1x256xf32, #tpu.memory_space<vmem>>, vector<1x256xf32>
    %4 = vector.broadcast %3 : vector<1x256xf32> to vector<8x256xf32>
    %5 = arith.addf %2, %4 : vector<8x256xf32>
    %6 = vector.extract_strided_slice %5 {offsets = [0, 0], sizes = [8, 128], strides = [1, 1]} : vector<8x256xf32> to vector<8x128xf32>
    %7 = vector.extract_strided_slice %5 {offsets = [0, 128], sizes = [8, 128], strides = [1, 1]} : vector<8x256xf32> to vector<8x128xf32>
    %8 = math.exp %7 : vector<8x128xf32>
    %c0_5 = arith.constant 0 : index
    %c0_6 = arith.constant 0 : index
    %c0_7 = arith.constant 0 : index
    %9 = vector.load %arg2[%c0_5, %c0_6, %c0_7] : memref<8x8x128xf32, #tpu.memory_space<vmem>>, vector<8x8x128xf32>
    %cst_8 = arith.constant -4.000000e+00 : f32
    %cst_9 = arith.constant 4.000000e+00 : f32
    %10 = vector.broadcast %cst_8 : f32 to vector<8x8x128xf32>
    %11 = arith.maximumf %10, %9 : vector<8x8x128xf32>
    %12 = vector.broadcast %cst_9 : f32 to vector<8x8x128xf32>
    %13 = arith.minimumf %12, %11 : vector<8x8x128xf32>
    %14 = vector.shape_cast %6 : vector<8x128xf32> to vector<8x1x128xf32>
    %15 = vector.shape_cast %8 : vector<8x128xf32> to vector<8x1x128xf32>
    %16 = vector.broadcast %15 : vector<8x1x128xf32> to vector<8x8x128xf32>
    %17 = arith.mulf %16, %13 : vector<8x8x128xf32>
    %18 = vector.broadcast %14 : vector<8x1x128xf32> to vector<8x8x128xf32>
    %19 = arith.addf %18, %17 : vector<8x8x128xf32>
    %20 = vector.shape_cast %19 : vector<8x8x128xf32> to vector<64x128xf32>
    %c0_10 = arith.constant 0 : index
    %c0_11 = arith.constant 0 : index
    %21 = vector.load %arg5[%c0_10, %c0_11] : memref<128x128xf32, #tpu.memory_space<vmem>>, vector<128x128xf32>
    %cst_12 = arith.constant dense<0.000000e+00> : vector<64x128xf32>
    %22 = tpu.matmul %20, %21, %cst_12 {dimension_numbers = #tpu.dot_dimension_numbers<[1], [0], [0], [1], [0, 0, 1, 1], [], []>} : vector<64x128xf32>, vector<128x128xf32>, vector<64x128xf32> -> vector<64x128xf32>
    %c0_13 = arith.constant 0 : index
    %c0_14 = arith.constant 0 : index
    %23 = vector.load %arg6[%c0_13, %c0_14] : memref<1x128xf32, #tpu.memory_space<vmem>>, vector<1x128xf32>
    %24 = vector.broadcast %23 : vector<1x128xf32> to vector<64x128xf32>
    %25 = arith.addf %22, %24 : vector<64x128xf32>
    %c0_15 = arith.constant 0 : index
    %c0_16 = arith.constant 0 : index
    %26 = vector.load %arg7[%c0_15, %c0_16] : memref<64x128xf32, #tpu.memory_space<vmem>>, vector<64x128xf32>
    tpu.vector_store %arg7[%c0_15, %c0_16], %25 {strides = array<i32>} : memref<64x128xf32, #tpu.memory_space<vmem>>, vector<64x128xf32>,
    %c0_17 = arith.constant 0 : index
    %c0_18 = arith.constant 0 : index
    %27 = vector.load %arg8[%c0_17, %c0_18] : memref<64x128xf32, #tpu.memory_space<vmem>>, vector<64x128xf32>
    tpu.vector_store %arg8[%c0_17, %c0_18], %20 {strides = array<i32>} : memref<64x128xf32, #tpu.memory_space<vmem>>, vector<64x128xf32>,
    %28 = tpu.concatenate %6, %8 in 1 : vector<8x128xf32>, vector<8x128xf32> -> vector<8x256xf32>
    %c0_19 = arith.constant 0 : index
    %c0_20 = arith.constant 0 : index
    %29 = vector.load %arg9[%c0_19, %c0_20] : memref<8x256xf32, #tpu.memory_space<vmem>>, vector<8x256xf32>
    tpu.vector_store %arg9[%c0_19, %c0_20], %28 {strides = array<i32>} : memref<8x256xf32, #tpu.memory_space<vmem>>, vector<8x256xf32>,
    return
  }
  func.func @transform_0(%arg0: i32) -> (i32, i32) {
    %c0_i32 = arith.constant 0 : i32
    %c0_i32_0 = arith.constant 0 : i32
    return %arg0, %c0_i32 : i32, i32
  }
  func.func @transform_1(%arg0: i32) -> (i32, i32, i32) {
    %c0_i32 = arith.constant 0 : i32
    %c0_i32_0 = arith.constant 0 : i32
    %c0_i32_1 = arith.constant 0 : i32
    return %arg0, %c0_i32, %c0_i32_0 : i32, i32, i32
  }
  func.func @transform_2(%arg0: i32) -> (i32, i32) {
    %c0_i32 = arith.constant 0 : i32
    %c0_i32_0 = arith.constant 0 : i32
    %c0_i32_1 = arith.constant 0 : i32
    return %c0_i32, %c0_i32_0 : i32, i32
  }
  func.func @transform_3(%arg0: i32) -> (i32, i32) {
    %c0_i32 = arith.constant 0 : i32
    %c0_i32_0 = arith.constant 0 : i32
    %c0_i32_1 = arith.constant 0 : i32
    return %c0_i32, %c0_i32_0 : i32, i32
  }
  func.func @transform_4(%arg0: i32) -> (i32, i32) {
    %c0_i32 = arith.constant 0 : i32
    %c0_i32_0 = arith.constant 0 : i32
    %c0_i32_1 = arith.constant 0 : i32
    return %c0_i32, %c0_i32_0 : i32, i32
  }
  func.func @transform_5(%arg0: i32) -> (i32, i32) {
    %c0_i32 = arith.constant 0 : i32
    %c0_i32_0 = arith.constant 0 : i32
    %c0_i32_1 = arith.constant 0 : i32
    return %c0_i32, %c0_i32_0 : i32, i32
  }
  func.func @transform_6(%arg0: i32) -> (i32, i32) {
    %c0_i32 = arith.constant 0 : i32
    %c0_i32_0 = arith.constant 0 : i32
    return %arg0, %c0_i32 : i32, i32
  }
  func.func @transform_7(%arg0: i32) -> (i32, i32) {
    %c0_i32 = arith.constant 0 : i32
    %c0_i32_0 = arith.constant 0 : i32
    return %arg0, %c0_i32 : i32, i32
  }
  func.func @transform_8(%arg0: i32) -> (i32, i32) {
    %c0_i32 = arith.constant 0 : i32
    %c0_i32_0 = arith.constant 0 : i32
    return %arg0, %c0_i32 : i32, i32
  }
}

</mosaic_0001>

<llo_original>
// kernel: tpu_custom_call.1
$region0: #{tpu_custom_call.1}
  #allocation0 [shape = 'u32[]', space=smem, size = 0x4, offset = 0x4, fixed_abs, tag = 'smem constant byte address 0x4 - core index']
  #allocation1 [shape = 'u32[144,128]{1,0:T(1,128)}', space=vmem, size = 0x12000, scoped, tag = 'internal scratch']
  %s0 = inlined_call_operand.hbm [shape: f32[16,32], index: 0, kind: input, shape index: {}]
  %s1 = inlined_call_operand.hbm [shape: f32[16,8,128], index: 1, kind: input, shape index: {}]
  %s2 = inlined_call_operand.hbm [shape: f32[32,256], index: 2, kind: input, shape index: {}]
  %s3 = inlined_call_operand.vmem [shape: f32[1,256], index: 3, kind: input, shape index: {}]
  %s4 = inlined_call_operand.hbm [shape: f32[128,128], index: 4, kind: input, shape index: {}]
  %s5 = inlined_call_operand.vmem [shape: f32[1,128], index: 5, kind: input, shape index: {}]
  %s6 = inlined_call_operand.hbm [shape: f32[128,128], index: 6, kind: output, shape index: {0}]
  %s7 = inlined_call_operand.hbm [shape: f32[128,128], index: 7, kind: output, shape index: {1}]
  %s8 = inlined_call_operand.hbm [shape: f32[16,256], index: 8, kind: output, shape index: {2}]
  %9 = xla_tuple %s6, %s7, %s8
  %s10 = sld [smem:[#allocation0]]
  $region89: #{tpu_custom_call.1} parent=0
    _
  %s12 = ssub.s32 1, %s10
  %s13 = scalar_select 0, %s12, %s10
  $region1: #{tpu_custom_call.1} parent=0
    #allocation2 [shape = 'u8[8192]{0}', space=vmem, size = 0x2000, scoped, tag = 'input window, operand 0']
    #allocation3 [shape = 's32[2]{0}', space=sflag, size = 0x8, scoped, tag = 'scoped memory for tpu_custom_call.1']
    #allocation4 [shape = 's32[2]{0}', space=sflag, size = 0x8, scoped, tag = 'scoped memory for tpu_custom_call.1']
    #allocation5 [shape = 'u8[65536]{0}', space=vmem, size = 0x10000, scoped, tag = 'input window, operand 1']
    #allocation6 [shape = 's32[2]{0}', space=sflag, size = 0x8, scoped, tag = 'scoped memory for tpu_custom_call.1']
    #allocation7 [shape = 'u8[32768]{0}', space=vmem, size = 0x8000, scoped, tag = 'input window, operand 2, single buffered']
    #allocation8 [shape = 'u8[65536]{0}', space=vmem, size = 0x10000, scoped, tag = 'input window, operand 4, single buffered']
    #allocation9 [shape = 's32[1]{0}', space=sflag, size = 0x4, scoped, tag = 'scoped memory for tpu_custom_call.1']
    #allocation10 [shape = 'u8[65536]{0}', space=vmem, size = 0x10000, scoped, tag = 'output window, operand 0']
    #allocation11 [shape = 'u8[65536]{0}', space=vmem, size = 0x10000, scoped, tag = 'output window, operand 1']
    #allocation12 [shape = 's32[2]{0}', space=sflag, size = 0x8, scoped, tag = 'scoped memory for tpu_custom_call.1']
    #allocation13 [shape = 'u8[16384]{0}', space=vmem, size = 0x4000, scoped, tag = 'output window, operand 2']
    %14 = vsyncpa [#allocation3], 0
    %s15 = scalar_lea.sflag [#allocation3], 1
    %16 = vsyncpa %s15, 0
    %17 = vsyncpa [#allocation6], 0
    %s18 = scalar_lea.sflag [#allocation6], 1
    %19 = vsyncpa %s18, 0
    %20 = vsyncpa [#allocation9], 0
    %21 = vsyncpa [#allocation4], 0
    %s22 = scalar_lea.sflag [#allocation4], 1
    %23 = vsyncpa %s22, 0
    %24 = vsyncpa [#allocation12], 0
    %s25 = scalar_lea.sflag [#allocation12], 1
    %26 = vsyncpa %s25, 0
    loop: start=0, step=1, limit=4
    $region2: #{tpu_custom_call.1} parent=1 // loop_pre_header
      _
    $region3: #{tpu_custom_call.1} parent=1 // loop_header
      %s28 = sphi 0, %s32
      %p29 = scmp.ge.s32.totalorder %s28, 4
      %s38 = sphi 0, %s40
      %s41 = sphi 0, %s38
      %s42 = sphi 0, %s41
      %s58 = sphi 0, %s42
      %s64 = sphi 0, %s66
      %s67 = sphi 0, %s64
      %s68 = sphi 0, %s67
      %s84 = sphi 0, %s68
      %s88 = sphi 0, %s88
      %s90 = sphi 0, %s88
      %s91 = sphi 0, %s90
      %s105 = sphi 0, %s91
      %s109 = sphi 0, %s109
      %s111 = sphi 0, %s109
      %s112 = sphi 0, %s111
      %s126 = sphi 0, %s112
      %s130 = sphi 0, %s130
      %s132 = sphi 0, %s130
      %s133 = sphi 0, %s132
      %s147 = sphi 0, %s133
      %s151 = sphi 0, %s151
      %s153 = sphi 0, %s151
      %s154 = sphi 0, %s153
      %s168 = sphi 0, %s154
      %s174 = sphi 0, %s176
      %s177 = sphi 0, %s174
      %s178 = sphi 0, %s177
      %s194 = sphi 0, %s178
      %s200 = sphi 0, %s202
      %s203 = sphi 0, %s200
      %s204 = sphi 0, %s203
      %s220 = sphi 0, %s204
      %s226 = sphi 0, %s228
      %s229 = sphi 0, %s226
      %s230 = sphi 0, %s229
      %s246 = sphi 0, %s230
    $region4: #{tpu_custom_call.1} parent=1 // loop_header_branch
      %31 = sbr.rel (%p29) target = $region8
    $region5: #{tpu_custom_call.1} parent=1 // loop_body
      %s33 = ssub.s32 %s28, 1
      %s34 = ssub.s32 %s28, 2
      %s35 = sadd.s32 %s28, 1
      %s36 = ssub.s32 %s28, %s35
      %p37 = scmp.eq.s32.totalorder %s36, 0
      %s39 = sadd.s32 %s38, 1
      %s40 = scalar_select %p37, %s38, %s39
      %p43 = pneg %p37
      %p44 = scmp.eq.s32.totalorder %s28, 1
      %p45 = por %p43, %p44
      %p46 = scmp.ne.s32.totalorder %s38, %s41
      %p47 = scmp.eq.s32.totalorder %s28, 0
      %p48 = por %p46, %p47
      %p49 = scmp.ne.s32.totalorder %s38, %s41
      %p50 = scmp.eq.s32.totalorder %s33, 1
      %p51 = por %p49, %p50
      %p52 = scmp.ne.s32.totalorder %s41, %s42
      %p53 = scmp.eq.s32.totalorder %s33, 0
      %p54 = por %p52, %p53
      %p55 = scmp.ne.s32.totalorder %s41, %s42
      %p56 = scmp.eq.s32.totalorder %s34, 1
      %p57 = por %p55, %p56
      %p59 = scmp.ne.s32.totalorder %s42, %s58
      %p60 = scmp.eq.s32.totalorder %s34, 0
      %p61 = por %p59, %p60
      %s62 = ssub.s32 %s28, %s35
      %p63 = scmp.eq.s32.totalorder %s62, 0
      %s65 = sadd.s32 %s64, 1
      %s66 = scalar_select %p63, %s64, %s65
      %p69 = pneg %p63
      %p70 = scmp.eq.s32.totalorder %s28, 1
      %p71 = por %p69, %p70
      %p72 = scmp.ne.s32.totalorder %s64, %s67
      %p73 = scmp.eq.s32.totalorder %s28, 0
      %p74 = por %p72, %p73
      %p75 = scmp.ne.s32.totalorder %s64, %s67
      %p76 = scmp.eq.s32.totalorder %s33, 1
      %p77 = por %p75, %p76
      %p78 = scmp.ne.s32.totalorder %s67, %s68
      %p79 = scmp.eq.s32.totalorder %s33, 0
      %p80 = por %p78, %p79
      %p81 = scmp.ne.s32.totalorder %s67, %s68
      %p82 = scmp.eq.s32.totalorder %s34, 1
      %p83 = por %p81, %p82
      %p85 = scmp.ne.s32.totalorder %s68, %s84
      %p86 = scmp.eq.s32.totalorder %s34, 0
      %p87 = por %p85, %p86
      %s89 = sadd.s32 %s88, 1
      %p92 = scmp.eq.s32.totalorder %s28, 1
      %p93 = scmp.ne.s32.totalorder %s88, %s90
      %p94 = scmp.eq.s32.totalorder %s28, 0
      %p95 = por %p93, %p94
      %p96 = scmp.ne.s32.totalorder %s88, %s90
      %p97 = scmp.eq.s32.totalorder %s33, 1
      %p98 = por %p96, %p97
      %p99 = scmp.ne.s32.totalorder %s90, %s91
      %p100 = scmp.eq.s32.totalorder %s33, 0
      %p101 = por %p99, %p100
      %p102 = scmp.ne.s32.totalorder %s90, %s91
      %p103 = scmp.eq.s32.totalorder %s34, 1
      %p104 = por %p102, %p103
      %p106 = scmp.ne.s32.totalorder %s91, %s105
      %p107 = scmp.eq.s32.totalorder %s34, 0
      %p108 = por %p106, %p107
      %s110 = sadd.s32 %s109, 1
      %p113 = scmp.eq.s32.totalorder %s28, 1
      %p114 = scmp.ne.s32.totalorder %s109, %s111
      %p115 = scmp.eq.s32.totalorder %s28, 0
      %p116 = por %p114, %p115
      %p117 = scmp.ne.s32.totalorder %s109, %s111
      %p118 = scmp.eq.s32.totalorder %s33, 1
      %p119 = por %p117, %p118
      %p120 = scmp.ne.s32.totalorder %s111, %s112
      %p121 = scmp.eq.s32.totalorder %s33, 0
      %p122 = por %p120, %p121
      %p123 = scmp.ne.s32.totalorder %s111, %s112
      %p124 = scmp.eq.s32.totalorder %s34, 1
      %p125 = por %p123, %p124
      %p127 = scmp.ne.s32.totalorder %s112, %s126
      %p128 = scmp.eq.s32.totalorder %s34, 0
      %p129 = por %p127, %p128
      %s131 = sadd.s32 %s130, 1
      %p134 = scmp.eq.s32.totalorder %s28, 1
      %p135 = scmp.ne.s32.totalorder %s130, %s132
      %p136 = scmp.eq.s32.totalorder %s28, 0
      %p137 = por %p135, %p136
      %p138 = scmp.ne.s32.totalorder %s130, %s132
      %p139 = scmp.eq.s32.totalorder %s33, 1
      %p140 = por %p138, %p139
      %p141 = scmp.ne.s32.totalorder %s132, %s133
      %p142 = scmp.eq.s32.totalorder %s33, 0
      %p143 = por %p141, %p142
      %p144 = scmp.ne.s32.totalorder %s132, %s133
      %p145 = scmp.eq.s32.totalorder %s34, 1
      %p146 = por %p144, %p145
      %p148 = scmp.ne.s32.totalorder %s133, %s147
      %p149 = scmp.eq.s32.totalorder %s34, 0
      %p150 = por %p148, %p149
      %s152 = sadd.s32 %s151, 1
      %p155 = scmp.eq.s32.totalorder %s28, 1
      %p156 = scmp.ne.s32.totalorder %s151, %s153
      %p157 = scmp.eq.s32.totalorder %s28, 0
      %p158 = por %p156, %p157
      %p159 = scmp.ne.s32.totalorder %s151, %s153
      %p160 = scmp.eq.s32.totalorder %s33, 1
      %p161 = por %p159, %p160
      %p162 = scmp.ne.s32.totalorder %s153, %s154
      %p163 = scmp.eq.s32.totalorder %s33, 0
      %p164 = por %p162, %p163
      %p165 = scmp.ne.s32.totalorder %s153, %s154
      %p166 = scmp.eq.s32.totalorder %s34, 1
      %p167 = por %p165, %p166
      %p169 = scmp.ne.s32.totalorder %s154, %s168
      %p170 = scmp.eq.s32.totalorder %s34, 0
      %p171 = por %p169, %p170
      %s172 = ssub.s32 %s28, %s35
      %p173 = scmp.eq.s32.totalorder %s172, 0
      %s175 = sadd.s32 %s174, 1
      %s176 = scalar_select %p173, %s174, %s175
      %p179 = pneg %p173
      %p180 = scmp.eq.s32.totalorder %s28, 1
      %p181 = por %p179, %p180
      %p182 = scmp.ne.s32.totalorder %s174, %s177
      %p183 = scmp.eq.s32.totalorder %s28, 0
      %p184 = por %p182, %p183
      %p185 = scmp.ne.s32.totalorder %s174, %s177
      %p186 = scmp.eq.s32.totalorder %s33, 1
      %p187 = por %p185, %p186
      %p188 = scmp.ne.s32.totalorder %s177, %s178
      %p189 = scmp.eq.s32.totalorder %s33, 0
      %p190 = por %p188, %p189
      %p191 = scmp.ne.s32.totalorder %s177, %s178
      %p192 = scmp.eq.s32.totalorder %s34, 1
      %p193 = por %p191, %p192
      %p195 = scmp.ne.s32.totalorder %s178, %s194
      %p196 = scmp.eq.s32.totalorder %s34, 0
      %p197 = por %p195, %p196
      %s198 = ssub.s32 %s28, %s35
      %p199 = scmp.eq.s32.totalorder %s198, 0
      %s201 = sadd.s32 %s200, 1
      %s202 = scalar_select %p199, %s200, %s201
      %p205 = pneg %p199
      %p206 = scmp.eq.s32.totalorder %s28, 1
      %p207 = por %p205, %p206
      %p208 = scmp.ne.s32.totalorder %s200, %s203
      %p209 = scmp.eq.s32.totalorder %s28, 0
      %p210 = por %p208, %p209
      %p211 = scmp.ne.s32.totalorder %s200, %s203
      %p212 = scmp.eq.s32.totalorder %s33, 1
      %p213 = por %p211, %p212
      %p214 = scmp.ne.s32.totalorder %s203, %s204
      %p215 = scmp.eq.s32.totalorder %s33, 0
      %p216 = por %p214, %p215
      %p217 = scmp.ne.s32.totalorder %s203, %s204
      %p218 = scmp.eq.s32.totalorder %s34, 1
      %p219 = por %p217, %p218
      %p221 = scmp.ne.s32.totalorder %s204, %s220
      %p222 = scmp.eq.s32.totalorder %s34, 0
      %p223 = por %p221, %p222
      %s224 = ssub.s32 %s28, %s35
      %p225 = scmp.eq.s32.totalorder %s224, 0
      %s227 = sadd.s32 %s226, 1
      %s228 = scalar_select %p225, %s226, %s227
      %p231 = pneg %p225
      %p232 = scmp.eq.s32.totalorder %s28, 1
      %p233 = por %p231, %p232
      %p234 = scmp.ne.s32.totalorder %s226, %s229
      %p235 = scmp.eq.s32.totalorder %s28, 0
      %p236 = por %p234, %p235
      %p237 = scmp.ne.s32.totalorder %s226, %s229
      %p238 = scmp.eq.s32.totalorder %s33, 1
      %p239 = por %p237, %p238
      %p240 = scmp.ne.s32.totalorder %s229, %s230
      %p241 = scmp.eq.s32.totalorder %s33, 0
      %p242 = por %p240, %p241
      %p243 = scmp.ne.s32.totalorder %s229, %s230
      %p244 = scmp.eq.s32.totalorder %s34, 1
      %p245 = por %p243, %p244
      %p247 = scmp.ne.s32.totalorder %s230, %s246
      %p248 = scmp.eq.s32.totalorder %s34, 0
      %p249 = por %p247, %p248
      %p250 = scmp.le.s32.totalorder 1, %s28
      %p251 = scmp.lt.s32.totalorder %s28, 3
      %p252 = pnand %p250, %p251
      %p253 = pneg %p252
      // Predicated region
      $region9: #{tpu_custom_call.1} parent=5 // pred_check
        _
      $region10: #{tpu_custom_call.1} parent=5 // pred_check_branch
        %255 = sbr.rel (%p252) target = $region12
      $region11: #{tpu_custom_call.1} parent=5 // pred_region
        %s256 = ssub.s32 %s28, 1
        // Predicated region
        $region13: #{tpu_custom_call.1} parent=11 // pred_check
          %p257 = pneg %p101
        $region14: #{tpu_custom_call.1} parent=11 // pred_check_branch
          %259 = sbr.rel (%p257) target = $region16
        $region15: #{tpu_custom_call.1} parent=11 // pred_region
          %s261 = ssub.s32 1024, 1024
          %262 = vsyncadd [#allocation6], %s261
          %s263 = sshll.u32 [#allocation7], 4
          %s264 = int_to_ptr.vmem [resolvable:$true] %s263
          %269 = dma.hbm_to_vmem [thread:$0]  %s2, 1024, %s264, [#allocation6], 256, 256, 16
        $region16: #{tpu_custom_call.1} parent=11 // pred_fallthru
          _
        // Predicated region
        $region17: #{tpu_custom_call.1} parent=11 // pred_check
          %p270 = pneg %p122
        $region18: #{tpu_custom_call.1} parent=11 // pred_check_branch
          %272 = sbr.rel (%p270) target = $region20
        $region19: #{tpu_custom_call.1} parent=11 // pred_region
          _
        $region20: #{tpu_custom_call.1} parent=11 // pred_fallthru
          _
        // Predicated region
        $region21: #{tpu_custom_call.1} parent=11 // pred_check
          %p273 = pneg %p143
        $region22: #{tpu_custom_call.1} parent=11 // pred_check_branch
          %275 = sbr.rel (%p273) target = $region24
        $region23: #{tpu_custom_call.1} parent=11 // pred_region
          %s277 = ssub.s32 2048, 2048
          %278 = vsyncadd [#allocation9], %s277
          %s279 = sshll.u32 [#allocation8], 4
          %s280 = int_to_ptr.vmem [resolvable:$true] %s279
          %285 = dma.hbm_to_vmem [thread:$0]  %s4, 2048, %s280, [#allocation9], 128, 128, 8
        $region24: #{tpu_custom_call.1} parent=11 // pred_fallthru
          _
        // Predicated region
        $region25: #{tpu_custom_call.1} parent=11 // pred_check
          %p286 = pneg %p164
        $region26: #{tpu_custom_call.1} parent=11 // pred_check_branch
          %288 = sbr.rel (%p286) target = $region28
        $region27: #{tpu_custom_call.1} parent=11 // pred_region
          _
        $region28: #{tpu_custom_call.1} parent=11 // pred_fallthru
          _
      $region12: #{tpu_custom_call.1} parent=5 // pred_fallthru
        _
      %p289 = scmp.lt.s32.totalorder %s28, 2
      // Predicated region
      $region29: #{tpu_custom_call.1} parent=5 // pred_check
        %p290 = pneg %p289
      $region30: #{tpu_custom_call.1} parent=5 // pred_check_branch
        %292 = sbr.rel (%p290) target = $region32
      $region31: #{tpu_custom_call.1} parent=5 // pred_region
        // Predicated region
        $region33: #{tpu_custom_call.1} parent=31 // pred_check
          %p293 = pneg %p48
        $region34: #{tpu_custom_call.1} parent=31 // pred_check_branch
          %295 = sbr.rel (%p293) target = $region36
        $region35: #{tpu_custom_call.1} parent=31 // pred_region
          %s296 = sand.u32 %s38, 1
          %s297 = scalar_lea.sflag [#allocation3], %s296
          %s298 = sand.u32 %s38, 1
          %s299 = smul.addr %s298, 8
          %s300 = scalar_lea.vmem [#allocation2], %s299
          %s302 = ssub.s32 128, 128
          %303 = vsyncadd %s297, %s302
          %s304 = smul.addr %s28, 128
          %s305 = scalar_lea.hbm %s0, %s304
          %s307 = sshll.u32 %s300, 4
          %s308 = int_to_ptr.vmem [resolvable:$true] %s307
          %310 = dma.hbm_to_vmem [thread:$0]  %s305, 128, %s308, %s297
        $region36: #{tpu_custom_call.1} parent=31 // pred_fallthru
          _
        // Predicated region
        $region37: #{tpu_custom_call.1} parent=31 // pred_check
          %p311 = pneg %p74
        $region38: #{tpu_custom_call.1} parent=31 // pred_check_branch
          %313 = sbr.rel (%p311) target = $region40
        $region39: #{tpu_custom_call.1} parent=31 // pred_region
          %s314 = sand.u32 %s28, 1
          %s315 = scalar_lea.sflag [#allocation6], %s314
          %s316 = sand.u32 %s64, 1
          %s317 = smul.addr %s316, 64
          %s318 = scalar_lea.vmem [#allocation5], %s317
          %s319 = smul.u32 8, %s28
          %s321 = ssub.s32 1024, 1024
          %322 = vsyncadd %s315, %s321
          %s323 = smul.addr %s319, 128
          %s324 = scalar_lea.hbm %s1, %s323
          %s325 = sshll.u32 %s318, 4
          %s326 = int_to_ptr.vmem [resolvable:$true] %s325
          %331 = dma.hbm_to_vmem [thread:$0]  %s324, 1024, %s326, %s315, 128, 128, 8
        $region40: #{tpu_custom_call.1} parent=31 // pred_fallthru
          _
      $region32: #{tpu_custom_call.1} parent=5 // pred_fallthru
        _
      %p332 = scmp.le.s32.totalorder 1, %s28
      %p333 = scmp.lt.s32.totalorder %s28, 3
      %p334 = pnand %p332, %p333
      %p335 = pneg %p334
      // Predicated region
      $region41: #{tpu_custom_call.1} parent=5 // pred_check
        _
      $region42: #{tpu_custom_call.1} parent=5 // pred_check_branch
        %337 = sbr.rel (%p334) target = $region44
      $region43: #{tpu_custom_call.1} parent=5 // pred_region
        %s338 = ssub.s32 %s28, 1
        %s339 = sand.u32 %s41, 1
        %s340 = scalar_lea.sflag [#allocation3], %s339
        %s341 = sand.u32 %s41, 1
        %s342 = smul.addr %s341, 8
        %s343 = scalar_lea.vmem [#allocation2], %s342
        // Predicated region
        $region45: #{tpu_custom_call.1} parent=43 // pred_check
          %p344 = pneg %p54
        $region46: #{tpu_custom_call.1} parent=43 // pred_check_branch
          %346 = sbr.rel (%p344) target = $region48
        $region47: #{tpu_custom_call.1} parent=43 // pred_region
          %347 = dma.done %s340, 128
        $region48: #{tpu_custom_call.1} parent=43 // pred_fallthru
          _
        %s348 = sand.u32 %s33, 1
        %s349 = scalar_lea.sflag [#allocation6], %s348
        %s350 = sand.u32 %s67, 1
        %s351 = smul.addr %s350, 64
        %s352 = scalar_lea.vmem [#allocation5], %s351
        // Predicated region
        $region49: #{tpu_custom_call.1} parent=43 // pred_check
          %p353 = pneg %p80
        $region50: #{tpu_custom_call.1} parent=43 // pred_check_branch
          %355 = sbr.rel (%p353) target = $region52
        $region51: #{tpu_custom_call.1} parent=43 // pred_region
          %356 = dma.done %s349, 1024
        $region52: #{tpu_custom_call.1} parent=43 // pred_fallthru
          _
        // Predicated region
        $region53: #{tpu_custom_call.1} parent=43 // pred_check
          %p357 = pneg %p101
        $region54: #{tpu_custom_call.1} parent=43 // pred_check_branch
          %359 = sbr.rel (%p357) target = $region56
        $region55: #{tpu_custom_call.1} parent=43 // pred_region
          %360 = dma.done [#allocation6], 1024
        $region56: #{tpu_custom_call.1} parent=43 // pred_fallthru
          _
        // Predicated region
        $region57: #{tpu_custom_call.1} parent=43 // pred_check
          %p361 = pneg %p143
        $region58: #{tpu_custom_call.1} parent=43 // pred_check_branch
          %363 = sbr.rel (%p361) target = $region60
        $region59: #{tpu_custom_call.1} parent=43 // pred_region
          %364 = dma.done [#allocation9], 2048
        $region60: #{tpu_custom_call.1} parent=43 // pred_fallthru
          _
        %s365 = sand.u32 %s41, 1
        %s366 = scalar_lea.sflag [#allocation3], %s365
        %s367 = sand.u32 %s41, 1
        %s368 = smul.addr %s367, 8
        %s369 = scalar_lea.vmem [#allocation2], %s368
        %p370 = pneg %p54
        %p371 = pneg %p51
        %s372 = sand.u32 %s33, 1
        %s373 = scalar_lea.sflag [#allocation6], %s372
        %s374 = sand.u32 %s67, 1
        %s375 = smul.addr %s374, 64
        %s376 = scalar_lea.vmem [#allocation5], %s375
        %p377 = pneg %p80
        %p378 = pneg %p77
        %p379 = pneg %p101
        %p380 = pneg %p98
        %p381 = pneg %p122
        %p382 = pneg %p119
        %p383 = pneg %p143
        %p384 = pneg %p140
        %p385 = pneg %p164
        %p386 = pneg %p161
        %p387 = pneg %p190
        %p388 = pneg %p187
        %s389 = sand.u32 %s177, 1
        %s390 = scalar_lea.sflag [#allocation4], %s389
        %s391 = sand.u32 %s177, 1
        %s392 = smul.addr %s391, 64
        %s393 = scalar_lea.vmem [#allocation10], %s392
        %p394 = pneg %p216
        %p395 = pneg %p213
        %s396 = sand.u32 %s33, 1
        %s397 = scalar_lea.sflag [#allocation12], %s396
        %s398 = sand.u32 %s203, 1
        %s399 = smul.addr %s398, 64
        %s400 = scalar_lea.vmem [#allocation11], %s399
        %p401 = pneg %p242
        %p402 = pneg %p239
        %s403 = sand.u32 %s33, 1
        %s404 = scalar_lea.sflag [#allocation12], %s403
        %s405 = sand.u32 %s229, 1
        %s406 = smul.addr %s405, 16
        %s407 = scalar_lea.vmem [#allocation13], %s406
        %s408 = smul.u32 8, %s33
        %s409 = smul.u32 8, %s33
        %s410 = smul.u32 8, %s33
        %v411 = vld [vmem:[%s343] sm:$0xff]
        %v412 = vld [vmem:[#allocation7] sm:$0xff]
        %v413 = vld [vmem:[#allocation7 + $0x8] sm:$0xff]
        %v414 = vld [vmem:[#allocation7 + $0x10] sm:$0xff]
        %v415 = vld [vmem:[#allocation7 + $0x18] sm:$0xff]
        %v416 = vld [vmem:[#allocation7 + $0x20] sm:$0xff]
        %v417 = vld [vmem:[#allocation7 + $0x28] sm:$0xff]
        %v418 = vld [vmem:[#allocation7 + $0x30] sm:$0xff]
        %v419 = vld [vmem:[#allocation7 + $0x38] sm:$0xff]
        %v420 = vld [vmem:[%s3] sm:$0x3]
        %v422 = vlaneseq
        %v423 = vshrl.u32 %v422, 7
        %v424 = vsub.s32 0, %v423
        %v425 = vrot.slane %v420, %v424
        %v426 = vlaneseq
        %v427 = vshrl.u32 %v426, 7
        %v428 = vsub.s32 1, %v427
        %v429 = vrot.slane %v420, %v428
        %vm432 = vcmask 261120
        %v434 = vsel %vm432, %v411, 0
        %436 = vmatprep.subr.mxu0 0.0
        %437 = vmatpush1.msra.mxu0 0.0
        %438 = vmatprep.subr.mxu0 0.0
        %439 = vmatpush1.msra.mxu0 0.0
        %440 = vmatprep.subr.mxu0 0.0
        %441 = vmatpush1.msra.mxu0 0.0
        %442 = vmatprep.subr.mxu0 0.0
        %443 = vmatpush1.msra.mxu0 0.0
        %444 = vmatprep.subr.mxu0 0.0
        %445 = vmatpush1.msra.mxu0 0.0
        %446 = vmatprep.subr.mxu0 0.0
        %447 = vmatpush1.msra.mxu0 0.0
        %448 = vmatprep.subr.mxu0 0.0
        %449 = vmatpush1.msra.mxu0 0.0
        %450 = vmatprep.subr.mxu0 0.0
        %451 = vmatpush1.msra.mxu0 0.0
        %452 = vmatprep.subr.mxu0 0.0
        %453 = vmatpush1.msra.mxu0 0.0
        %454 = vmatprep.subr.mxu0 0.0
        %455 = vmatpush1.msra.mxu0 0.0
        %456 = vmatprep.subr.mxu0 0.0
        %457 = vmatpush1.msra.mxu0 0.0
        %458 = vmatprep.subr.mxu0 0.0
        %459 = vmatpush1.msra.mxu0 0.0
        %460 = vmatprep.subr.mxu0 %v419
        %461 = vmatpush1.msra.mxu0 %v418
        %462 = vmatprep.subr.mxu0 %v417
        %463 = vmatpush1.msra.mxu0 %v416
        %464 = vmatprep.subr.mxu0 %v415
        %465 = vmatpush1.msra.mxu0 %v414
        %466 = vmatprep.subr.mxu0 %v413
        %467 = vmatpush1.msra.mxu0 %v412
        %468 = vmatprep.subr.mxu0 0.0
        %469 = vmatpush2.msra.mxu0 0.0
        %470 = vmatprep.subr.mxu0 0.0
        %471 = vmatpush2.msra.mxu0 0.0
        %472 = vmatprep.subr.mxu0 0.0
        %473 = vmatpush2.msra.mxu0 0.0
        %474 = vmatprep.subr.mxu0 0.0
        %475 = vmatpush2.msra.mxu0 0.0
        %476 = vmatprep.subr.mxu0 0.0
        %477 = vmatpush2.msra.mxu0 0.0
        %478 = vmatprep.subr.mxu0 0.0
        %479 = vmatpush2.msra.mxu0 0.0
        %480 = vmatprep.subr.mxu0 0.0
        %481 = vmatpush2.msra.mxu0 0.0
        %482 = vmatprep.subr.mxu0 0.0
        %483 = vmatpush2.msra.mxu0 0.0
        %484 = vmatprep.subr.mxu0 0.0
        %485 = vmatpush2.msra.mxu0 0.0
        %486 = vmatprep.subr.mxu0 0.0
        %487 = vmatpush2.msra.mxu0 0.0
        %488 = vmatprep.subr.mxu0 0.0
        %489 = vmatpush2.msra.mxu0 0.0
        %490 = vmatprep.subr.mxu0 0.0
        %491 = vmatpush2.msra.mxu0 0.0
        %492 = vmatprep.subr.mxu0 0.0
        %493 = vmatpush2.msra.mxu0 0.0
        %494 = vmatprep.subr.mxu0 0.0
        %495 = vmatpush2.msra.mxu0 0.0
        %496 = vmatprep.subr.mxu0 0.0
        %497 = vmatpush2.msra.mxu0 0.0
        %498 = vmatprep.subr.mxu0 0.0
        %499 = vmatpush2.msra.mxu0 0.0
        %500 = vmatprep.mubr.f32.mxu0 0.0
        %501 = vmatmul.mubr.f32.gmra.mxu0 %v434
        %v502 = vpop.f32.mrf.mxu0
        %v503 = vadd.f32 %v425, %v502
        %v504 = vpop.f32.mrf.mxu0
        %v505 = vadd.f32 %v429, %v504
        %506 = vdwg.mxu0
        %v507 = vmul.f32 %v505, 1.442695
        %v508 = vpow.pop %v507
        %v509 = vld [vmem:[%s352] sm:$0xff]
        %v510 = vld [vmem:[%s352 + $0x8] sm:$0xff]
        %v511 = vld [vmem:[%s352 + $0x10] sm:$0xff]
        %v512 = vld [vmem:[%s352 + $0x18] sm:$0xff]
        %v513 = vld [vmem:[%s352 + $0x20] sm:$0xff]
        %v514 = vld [vmem:[%s352 + $0x28] sm:$0xff]
        %v515 = vld [vmem:[%s352 + $0x30] sm:$0xff]
        %v516 = vld [vmem:[%s352 + $0x38] sm:$0xff]
        %v517 = vmax.f32 %v509, -4.0
        %v518 = vmax.f32 %v510, -4.0
        %v519 = vmax.f32 %v511, -4.0
        %v520 = vmax.f32 %v512, -4.0
        %v521 = vmax.f32 %v513, -4.0
        %v522 = vmax.f32 %v514, -4.0
        %v523 = vmax.f32 %v515, -4.0
        %v524 = vmax.f32 %v516, -4.0
        %v525 = vmin.f32 %v517, 4.0
        %v526 = vmin.f32 %v518, 4.0
        %v527 = vmin.f32 %v519, 4.0
        %v528 = vmin.f32 %v520, 4.0
        %v529 = vmin.f32 %v521, 4.0
        %v530 = vmin.f32 %v522, 4.0
        %v531 = vmin.f32 %v523, 4.0
        %v532 = vmin.f32 %v524, 4.0
        %v534 = vcombine.high %v503, %v503
        %v536 = vunpack.c.l.s4 1966171168
        %v537 = vunpack.c.0.s8 %v536
        %v538 = vlaneseq
        %v539 = vshrl.u32 %v538, 7
        %v540 = vsub.s32 %v537, %v539
        %v541 = vrot.slane %v503, %v540
        %v543 = vunpack.c.l.s4 1966171168
        %v544 = vunpack.c.0.s8 %v543
        %v545 = vlaneseq
        %v546 = vshrl.u32 %v545, 7
        %v547 = vsub.s32 %v544, %v546
        %v548 = vrot.slane %v534, %v547
        %v549 = vcombine.high %v541, %v541
        %v550 = vcombine.high %v548, %v548
        %v552 = vunpack.c.l.s4 1966171168
        %v553 = vunpack.c.0.s8 %v552
        %v554 = vlaneseq
        %v555 = vshrl.u32 %v554, 7
        %v556 = vsub.s32 %v553, %v555
        %v557 = vrot.slane %v541, %v556
        %v559 = vunpack.c.l.s4 1966171168
        %v560 = vunpack.c.0.s8 %v559
        %v561 = vlaneseq
        %v562 = vshrl.u32 %v561, 7
        %v563 = vsub.s32 %v560, %v562
        %v564 = vrot.slane %v548, %v563
        %v566 = vunpack.c.l.s4 1966171168
        %v567 = vunpack.c.0.s8 %v566
        %v568 = vlaneseq
        %v569 = vshrl.u32 %v568, 7
        %v570 = vsub.s32 %v567, %v569
        %v571 = vrot.slane %v549, %v570
        %v573 = vunpack.c.l.s4 1966171168
        %v574 = vunpack.c.0.s8 %v573
        %v575 = vlaneseq
        %v576 = vshrl.u32 %v575, 7
        %v577 = vsub.s32 %v574, %v576
        %v578 = vrot.slane %v550, %v577
        %v579 = vcombine.high %v557, %v557
        %v580 = vcombine.high %v564, %v564
        %v581 = vcombine.high %v571, %v571
        %v582 = vcombine.high %v578, %v578
        %v584 = vcombine.high %v508, %v508
        %v586 = vunpack.c.l.s4 1966171168
        %v587 = vunpack.c.0.s8 %v586
        %v588 = vlaneseq
        %v589 = vshrl.u32 %v588, 7
        %v590 = vsub.s32 %v587, %v589
        %v591 = vrot.slane %v508, %v590
        %v593 = vunpack.c.l.s4 1966171168
        %v594 = vunpack.c.0.s8 %v593
        %v595 = vlaneseq
        %v596 = vshrl.u32 %v595, 7
        %v597 = vsub.s32 %v594, %v596
        %v598 = vrot.slane %v584, %v597
        %v599 = vcombine.high %v591, %v591
        %v600 = vcombine.high %v598, %v598
        %v602 = vunpack.c.l.s4 1966171168
        %v603 = vunpack.c.0.s8 %v602
        %v604 = vlaneseq
        %v605 = vshrl.u32 %v604, 7
        %v606 = vsub.s32 %v603, %v605
        %v607 = vrot.slane %v591, %v606
        %v609 = vunpack.c.l.s4 1966171168
        %v610 = vunpack.c.0.s8 %v609
        %v611 = vlaneseq
        %v612 = vshrl.u32 %v611, 7
        %v613 = vsub.s32 %v610, %v612
        %v614 = vrot.slane %v598, %v613
        %v616 = vunpack.c.l.s4 1966171168
        %v617 = vunpack.c.0.s8 %v616
        %v618 = vlaneseq
        %v619 = vshrl.u32 %v618, 7
        %v620 = vsub.s32 %v617, %v619
        %v621 = vrot.slane %v599, %v620
        %v623 = vunpack.c.l.s4 1966171168
        %v624 = vunpack.c.0.s8 %v623
        %v625 = vlaneseq
        %v626 = vshrl.u32 %v625, 7
        %v627 = vsub.s32 %v624, %v626
        %v628 = vrot.slane %v600, %v627
        %v629 = vcombine.high %v607, %v607
        %v630 = vcombine.high %v614, %v614
        %v631 = vcombine.high %v621, %v621
        %v632 = vcombine.high %v628, %v628
        %v633 = vlaneseq
        %v634 = vshrl.u32 %v633, 7
        %v635 = vsub.s32 0, %v634
        %v636 = vrot.slane %v607, %v635
        %v637 = vlaneseq
        %v638 = vshrl.u32 %v637, 7
        %v639 = vsub.s32 0, %v638
        %v640 = vrot.slane %v621, %v639
        %v641 = vlaneseq
        %v642 = vshrl.u32 %v641, 7
        %v643 = vsub.s32 0, %v642
        %v644 = vrot.slane %v629, %v643
        %v645 = vlaneseq
        %v646 = vshrl.u32 %v645, 7
        %v647 = vsub.s32 0, %v646
        %v648 = vrot.slane %v631, %v647
        %v649 = vlaneseq
        %v650 = vshrl.u32 %v649, 7
        %v651 = vsub.s32 0, %v650
        %v652 = vrot.slane %v614, %v651
        %v653 = vlaneseq
        %v654 = vshrl.u32 %v653, 7
        %v655 = vsub.s32 0, %v654
        %v656 = vrot.slane %v628, %v655
        %v657 = vlaneseq
        %v658 = vshrl.u32 %v657, 7
        %v659 = vsub.s32 0, %v658
        %v660 = vrot.slane %v630, %v659
        %v661 = vlaneseq
        %v662 = vshrl.u32 %v661, 7
        %v663 = vsub.s32 0, %v662
        %v664 = vrot.slane %v632, %v663
        %v673 = vmul.f32 %v636, %v525
        %v674 = vmul.f32 %v640, %v526
        %v675 = vmul.f32 %v644, %v527
        %v676 = vmul.f32 %v648, %v528
        %v677 = vmul.f32 %v652, %v529
        %v678 = vmul.f32 %v656, %v530
        %v679 = vmul.f32 %v660, %v531
        %v680 = vmul.f32 %v664, %v532
        %v681 = vlaneseq
        %v682 = vshrl.u32 %v681, 7
        %v683 = vsub.s32 0, %v682
        %v684 = vrot.slane %v557, %v683
        %v685 = vlaneseq
        %v686 = vshrl.u32 %v685, 7
        %v687 = vsub.s32 0, %v686
        %v688 = vrot.slane %v571, %v687
        %v689 = vlaneseq
        %v690 = vshrl.u32 %v689, 7
        %v691 = vsub.s32 0, %v690
        %v692 = vrot.slane %v579, %v691
        %v693 = vlaneseq
        %v694 = vshrl.u32 %v693, 7
        %v695 = vsub.s32 0, %v694
        %v696 = vrot.slane %v581, %v695
        %v697 = vlaneseq
        %v698 = vshrl.u32 %v697, 7
        %v699 = vsub.s32 0, %v698
        %v700 = vrot.slane %v564, %v699
        %v701 = vlaneseq
        %v702 = vshrl.u32 %v701, 7
        %v703 = vsub.s32 0, %v702
        %v704 = vrot.slane %v578, %v703
        %v705 = vlaneseq
        %v706 = vshrl.u32 %v705, 7
        %v707 = vsub.s32 0, %v706
        %v708 = vrot.slane %v580, %v707
        %v709 = vlaneseq
        %v710 = vshrl.u32 %v709, 7
        %v711 = vsub.s32 0, %v710
        %v712 = vrot.slane %v582, %v711
        %v721 = vadd.f32 %v684, %v673
        %v722 = vadd.f32 %v688, %v674
        %v723 = vadd.f32 %v692, %v675
        %v724 = vadd.f32 %v696, %v676
        %v725 = vadd.f32 %v700, %v677
        %v726 = vadd.f32 %v704, %v678
        %v727 = vadd.f32 %v708, %v679
        %v728 = vadd.f32 %v712, %v680
        %v729 = vld [vmem:[#allocation8] sm:$0xff]
        %v730 = vld [vmem:[#allocation8 + $0x8] sm:$0xff]
        %v731 = vld [vmem:[#allocation8 + $0x10] sm:$0xff]
        %v732 = vld [vmem:[#allocation8 + $0x18] sm:$0xff]
        %v733 = vld [vmem:[#allocation8 + $0x20] sm:$0xff]
        %v734 = vld [vmem:[#allocation8 + $0x28] sm:$0xff]
        %v735 = vld [vmem:[#allocation8 + $0x30] sm:$0xff]
        %v736 = vld [vmem:[#allocation8 + $0x38] sm:$0xff]
        %v737 = vld [vmem:[#allocation8 + $0x40] sm:$0xff]
        %v738 = vld [vmem:[#allocation8 + $0x48] sm:$0xff]
        %v739 = vld [vmem:[#allocation8 + $0x50] sm:$0xff]
        %v740 = vld [vmem:[#allocation8 + $0x58] sm:$0xff]
        %v741 = vld [vmem:[#allocation8 + $0x60] sm:$0xff]
        %v742 = vld [vmem:[#allocation8 + $0x68] sm:$0xff]
        %v743 = vld [vmem:[#allocation8 + $0x70] sm:$0xff]
        %v744 = vld [vmem:[#allocation8 + $0x78] sm:$0xff]
        %v745 = vld [vmem:[%s5] sm:$0x1]
        %v747 = vlaneseq
        %v748 = vshrl.u32 %v747, 7
        %v749 = vsub.s32 0, %v748
        %v750 = vrot.slane %v745, %v749
        %752 = vmatprep.subr.mxu0 0.0
        %753 = vmatpush1.msra.mxu0 %v744
        %754 = vmatprep.subr.mxu0 0.0
        %755 = vmatpush1.msra.mxu0 %v743
        %756 = vmatprep.subr.mxu0 0.0
        %757 = vmatpush1.msra.mxu0 %v742
        %758 = vmatprep.subr.mxu0 0.0
        %759 = vmatpush1.msra.mxu0 %v741
        %760 = vmatprep.subr.mxu0 0.0
        %761 = vmatpush1.msra.mxu0 %v740
        %762 = vmatprep.subr.mxu0 0.0
        %763 = vmatpush1.msra.mxu0 %v739
        %764 = vmatprep.subr.mxu0 0.0
        %765 = vmatpush1.msra.mxu0 %v738
        %766 = vmatprep.subr.mxu0 0.0
        %767 = vmatpush1.msra.mxu0 %v737
        %768 = vmatprep.subr.mxu0 0.0
        %769 = vmatpush1.msra.mxu0 %v736
        %770 = vmatprep.subr.mxu0 0.0
        %771 = vmatpush1.msra.mxu0 %v735
        %772 = vmatprep.subr.mxu0 0.0
        %773 = vmatpush1.msra.mxu0 %v734
        %774 = vmatprep.subr.mxu0 0.0
        %775 = vmatpush1.msra.mxu0 %v733
        %776 = vmatprep.subr.mxu0 0.0
        %777 = vmatpush1.msra.mxu0 %v732
        %778 = vmatprep.subr.mxu0 0.0
        %779 = vmatpush1.msra.mxu0 %v731
        %780 = vmatprep.subr.mxu0 0.0
        %781 = vmatpush1.msra.mxu0 %v730
        %782 = vmatprep.subr.mxu0 0.0
        %783 = vmatpush1.msra.mxu0 %v729
        %784 = vmatprep.subr.mxu0 0.0
        %785 = vmatpush2.msra.mxu0 0.0
        %786 = vmatprep.subr.mxu0 0.0
        %787 = vmatpush2.msra.mxu0 0.0
        %788 = vmatprep.subr.mxu0 0.0
        %789 = vmatpush2.msra.mxu0 0.0
        %790 = vmatprep.subr.mxu0 0.0
        %791 = vmatpush2.msra.mxu0 0.0
        %792 = vmatprep.subr.mxu0 0.0
        %793 = vmatpush2.msra.mxu0 0.0
        %794 = vmatprep.subr.mxu0 0.0
        %795 = vmatpush2.msra.mxu0 0.0
        %796 = vmatprep.subr.mxu0 0.0
        %797 = vmatpush2.msra.mxu0 0.0
        %798 = vmatprep.subr.mxu0 0.0
        %799 = vmatpush2.msra.mxu0 0.0
        %800 = vmatprep.subr.mxu0 0.0
        %801 = vmatpush2.msra.mxu0 0.0
        %802 = vmatprep.subr.mxu0 0.0
        %803 = vmatpush2.msra.mxu0 0.0
        %804 = vmatprep.subr.mxu0 0.0
        %805 = vmatpush2.msra.mxu0 0.0
        %806 = vmatprep.subr.mxu0 0.0
        %807 = vmatpush2.msra.mxu0 0.0
        %808 = vmatprep.subr.mxu0 0.0
        %809 = vmatpush2.msra.mxu0 0.0
        %810 = vmatprep.subr.mxu0 0.0
        %811 = vmatpush2.msra.mxu0 0.0
        %812 = vmatprep.subr.mxu0 0.0
        %813 = vmatpush2.msra.mxu0 0.0
        %814 = vmatprep.subr.mxu0 0.0
        %815 = vmatpush2.msra.mxu0 0.0
        %816 = vmatprep.mubr.f32.mxu0 0.0
        %817 = vmatmul.mubr.f32.gmra.mxu0 %v721
        %v818 = vpop.f32.mrf.mxu0
        %v819 = vadd.f32 %v750, %v818
        %v820 = vpop.f32.mrf.mxu0
        %821 = vmatprep.mubr.f32.mxu0 0.0
        %822 = vmatmul.mubr.f32.gmra.mxu0 %v722
        %v823 = vpop.f32.mrf.mxu0
        %v824 = vadd.f32 %v750, %v823
        %v825 = vpop.f32.mrf.mxu0
        %826 = vmatprep.mubr.f32.mxu0 0.0
        %827 = vmatmul.mubr.f32.gmra.mxu0 %v723
        %v828 = vpop.f32.mrf.mxu0
        %v829 = vadd.f32 %v750, %v828
        %v830 = vpop.f32.mrf.mxu0
        %831 = vmatprep.mubr.f32.mxu0 0.0
        %832 = vmatmul.mubr.f32.gmra.mxu0 %v724
        %v833 = vpop.f32.mrf.mxu0
        %v834 = vadd.f32 %v750, %v833
        %v835 = vpop.f32.mrf.mxu0
        %836 = vmatprep.mubr.f32.mxu0 0.0
        %837 = vmatmul.mubr.f32.gmra.mxu0 %v725
        %v838 = vpop.f32.mrf.mxu0
        %v839 = vadd.f32 %v750, %v838
        %v840 = vpop.f32.mrf.mxu0
        %841 = vmatprep.mubr.f32.mxu0 0.0
        %842 = vmatmul.mubr.f32.gmra.mxu0 %v726
        %v843 = vpop.f32.mrf.mxu0
        %v844 = vadd.f32 %v750, %v843
        %v845 = vpop.f32.mrf.mxu0
        %846 = vmatprep.mubr.f32.mxu0 0.0
        %847 = vmatmul.mubr.f32.gmra.mxu0 %v727
        %v848 = vpop.f32.mrf.mxu0
        %v849 = vadd.f32 %v750, %v848
        %v850 = vpop.f32.mrf.mxu0
        %851 = vmatprep.mubr.f32.mxu0 0.0
        %852 = vmatmul.mubr.f32.gmra.mxu0 %v728
        %v853 = vpop.f32.mrf.mxu0
        %v854 = vadd.f32 %v750, %v853
        %v855 = vpop.f32.mrf.mxu0
        %856 = vdwg.mxu0
        %857 = vst [vmem:[%s393] sm:$0xff] %v819
        %858 = vst [vmem:[%s393 + $0x8] sm:$0xff] %v824
        %859 = vst [vmem:[%s393 + $0x10] sm:$0xff] %v829
        %860 = vst [vmem:[%s393 + $0x18] sm:$0xff] %v834
        %861 = vst [vmem:[%s393 + $0x20] sm:$0xff] %v839
        %862 = vst [vmem:[%s393 + $0x28] sm:$0xff] %v844
        %863 = vst [vmem:[%s393 + $0x30] sm:$0xff] %v849
        %864 = vst [vmem:[%s393 + $0x38] sm:$0xff] %v854
        %865 = vst [vmem:[%s400] sm:$0xff] %v721
        %866 = vst [vmem:[%s400 + $0x8] sm:$0xff] %v722
        %867 = vst [vmem:[%s400 + $0x10] sm:$0xff] %v723
        %868 = vst [vmem:[%s400 + $0x18] sm:$0xff] %v724
        %869 = vst [vmem:[%s400 + $0x20] sm:$0xff] %v725
        %870 = vst [vmem:[%s400 + $0x28] sm:$0xff] %v726
        %871 = vst [vmem:[%s400 + $0x30] sm:$0xff] %v727
        %872 = vst [vmem:[%s400 + $0x38] sm:$0xff] %v728
        %873 = vst [vmem:[%s407] sm:$0xff] %v503
        %874 = vst [vmem:[%s407 + $0x8] sm:$0xff] %v508
        %s875 = sand.u32 %s177, 1
        %s876 = scalar_lea.sflag [#allocation4], %s875
        %s877 = sand.u32 %s177, 1
        %s878 = smul.addr %s877, 64
        %s879 = scalar_lea.vmem [#allocation10], %s878
        %s880 = sand.u32 %s33, 1
        %s881 = scalar_lea.sflag [#allocation12], %s880
        %s882 = sand.u32 %s203, 1
        %s883 = smul.addr %s882, 64
        %s884 = scalar_lea.vmem [#allocation11], %s883
        %s885 = sand.u32 %s33, 1
        %s886 = scalar_lea.sflag [#allocation12], %s885
        %s887 = sand.u32 %s229, 1
        %s888 = smul.addr %s887, 16
        %s889 = scalar_lea.vmem [#allocation13], %s888
        // Predicated region
        $region61: #{tpu_custom_call.1} parent=43 // pred_check
          %p890 = pneg %p187
        $region62: #{tpu_custom_call.1} parent=43 // pred_check_branch
          %892 = sbr.rel (%p890) target = $region64
        $region63: #{tpu_custom_call.1} parent=43 // pred_region
          %s893 = smul.u32 8, %s33
          %s895 = ssub.s32 1024, 1024
          %896 = vsyncadd %s876, %s895
          %s897 = smul.addr %s893, 128
          %s898 = scalar_lea.hbm %s6, %s897
          %s899 = sshll.u32 %s879, 4
          %s900 = int_to_ptr.vmem [resolvable:$true] %s899
          %905 = dma.vmem_to_hbm [thread:$0]  %s900, 1024, %s898, %s876, 128, 128, 8
        $region64: #{tpu_custom_call.1} parent=43 // pred_fallthru
          _
        // Predicated region
        $region65: #{tpu_custom_call.1} parent=43 // pred_check
          %p906 = pneg %p213
        $region66: #{tpu_custom_call.1} parent=43 // pred_check_branch
          %908 = sbr.rel (%p906) target = $region68
        $region67: #{tpu_custom_call.1} parent=43 // pred_region
          %s909 = smul.u32 8, %s33
          %s911 = ssub.s32 1024, 1024
          %912 = vsyncadd %s881, %s911
          %s913 = smul.addr %s909, 128
          %s914 = scalar_lea.hbm %s7, %s913
          %s915 = sshll.u32 %s884, 4
          %s916 = int_to_ptr.vmem [resolvable:$true] %s915
          %921 = dma.vmem_to_hbm [thread:$0]  %s916, 1024, %s914, %s881, 128, 128, 8
        $region68: #{tpu_custom_call.1} parent=43 // pred_fallthru
          _
        // Predicated region
        $region69: #{tpu_custom_call.1} parent=43 // pred_check
          %p922 = pneg %p239
        $region70: #{tpu_custom_call.1} parent=43 // pred_check_branch
          %924 = sbr.rel (%p922) target = $region72
        $region71: #{tpu_custom_call.1} parent=43 // pred_region
          %s926 = ssub.s32 256, 256
          %927 = vsyncadd %s886, %s926
          %s928 = smul.addr %s33, 2
          %s929 = smul.addr %s928, 128
          %s930 = scalar_lea.hbm %s8, %s929
          %s932 = sshll.u32 %s889, 4
          %s933 = int_to_ptr.vmem [resolvable:$true] %s932
          %935 = dma.vmem_to_hbm [thread:$0]  %s933, 256, %s930, %s886
        $region72: #{tpu_custom_call.1} parent=43 // pred_fallthru
          _
      $region44: #{tpu_custom_call.1} parent=5 // pred_fallthru
        _
      %p936 = scmp.le.s32.totalorder 2, %s28
      // Predicated region
      $region73: #{tpu_custom_call.1} parent=5 // pred_check
        %p937 = pneg %p936
      $region74: #{tpu_custom_call.1} parent=5 // pred_check_branch
        %939 = sbr.rel (%p937) target = $region76
      $region75: #{tpu_custom_call.1} parent=5 // pred_region
        %s940 = ssub.s32 %s28, 2
        // Predicated region
        $region77: #{tpu_custom_call.1} parent=75 // pred_check
          %p941 = pneg %p193
        $region78: #{tpu_custom_call.1} parent=75 // pred_check_branch
          %943 = sbr.rel (%p941) target = $region80
        $region79: #{tpu_custom_call.1} parent=75 // pred_region
          %s944 = sand.u32 %s178, 1
          %s945 = scalar_lea.sflag [#allocation4], %s944
          %s946 = sand.u32 %s178, 1
          %s947 = smul.addr %s946, 64
          %s948 = scalar_lea.vmem [#allocation10], %s947
          %949 = dma.done %s945, 1024
        $region80: #{tpu_custom_call.1} parent=75 // pred_fallthru
          _
        // Predicated region
        $region81: #{tpu_custom_call.1} parent=75 // pred_check
          %p950 = pneg %p219
        $region82: #{tpu_custom_call.1} parent=75 // pred_check_branch
          %952 = sbr.rel (%p950) target = $region84
        $region83: #{tpu_custom_call.1} parent=75 // pred_region
          %s953 = sand.u32 %s34, 1
          %s954 = scalar_lea.sflag [#allocation12], %s953
          %s955 = sand.u32 %s204, 1
          %s956 = smul.addr %s955, 64
          %s957 = scalar_lea.vmem [#allocation11], %s956
          %958 = dma.done %s954, 1024
        $region84: #{tpu_custom_call.1} parent=75 // pred_fallthru
          _
        // Predicated region
        $region85: #{tpu_custom_call.1} parent=75 // pred_check
          %p959 = pneg %p245
        $region86: #{tpu_custom_call.1} parent=75 // pred_check_branch
          %961 = sbr.rel (%p959) target = $region88
        $region87: #{tpu_custom_call.1} parent=75 // pred_region
          %s962 = sand.u32 %s34, 1
          %s963 = scalar_lea.sflag [#allocation12], %s962
          %s964 = sand.u32 %s230, 1
          %s965 = smul.addr %s964, 16
          %s966 = scalar_lea.vmem [#allocation13], %s965
          %967 = dma.done %s963, 256
        $region88: #{tpu_custom_call.1} parent=75 // pred_fallthru
          _
      $region76: #{tpu_custom_call.1} parent=5 // pred_fallthru
        _
    $region6: #{tpu_custom_call.1} parent=1 // loop_footer
      %s32 = sadd.s32 1, %s28
    $region7: #{tpu_custom_call.1} parent=1 // loop_footer_branch
      %27 = sbr.rel target = $region3
    $region8: #{tpu_custom_call.1} parent=1 // loop_exit
      _
    %968 = vsyncpa [#allocation3], 1
    %s969 = scalar_lea.sflag [#allocation3], 1
    %970 = vsyncpa %s969, 1
    %971 = vsyncpa [#allocation6], 1
    %s972 = scalar_lea.sflag [#allocation6], 1
    %973 = vsyncpa %s972, 1
    %974 = vsyncpa [#allocation9], 1
    %975 = vsyncpa [#allocation4], 1
    %s976 = scalar_lea.sflag [#allocation4], 1
    %977 = vsyncpa %s976, 1
    %978 = vsyncpa [#allocation12], 1
    %s979 = scalar_lea.sflag [#allocation12], 1
    %980 = vsyncpa %s979, 1

// kernel: tpu_custom_call.1
$region0: #{tpu_custom_call.1}
  #allocation0 [shape = 'u32[]', space=smem, size = 0x4, offset = 0x4, fixed_abs, tag = 'smem constant byte address 0x4 - core index']
  #allocation1 [shape = 'u32[144,128]{1,0:T(1,128)}', space=vmem, size = 0x12000, scoped, tag = 'internal scratch']
  %s0 = inlined_call_operand.hbm [shape: f32[16,32], index: 0, kind: input, shape index: {}]
  %s1 = inlined_call_operand.hbm [shape: f32[16,8,128], index: 1, kind: input, shape index: {}]
  %s2 = inlined_call_operand.hbm [shape: f32[32,256], index: 2, kind: input, shape index: {}]
  %s3 = inlined_call_operand.vmem [shape: f32[1,256], index: 3, kind: input, shape index: {}]
  %s4 = inlined_call_operand.hbm [shape: f32[128,128], index: 4, kind: input, shape index: {}]
  %s5 = inlined_call_operand.vmem [shape: f32[1,128], index: 5, kind: input, shape index: {}]
  %s6 = inlined_call_operand.hbm [shape: f32[128,128], index: 6, kind: output, shape index: {0}]
  %s7 = inlined_call_operand.hbm [shape: f32[128,128], index: 7, kind: output, shape index: {1}]
  %s8 = inlined_call_operand.hbm [shape: f32[16,256], index: 8, kind: output, shape index: {2}]
  %9 = xla_tuple %s6, %s7, %s8
  %s10 = sld [smem:[#allocation0]]
  $region89: #{tpu_custom_call.1} parent=0
    _
  %s12 = ssub.s32 1, %s10
  %s13 = scalar_select 0, %s12, %s10
  $region1: #{tpu_custom_call.1} parent=0
    #allocation2 [shape = 'u8[8192]{0}', space=vmem, size = 0x2000, scoped, tag = 'input window, operand 0']
    #allocation3 [shape = 's32[2]{0}', space=sflag, size = 0x8, scoped, tag = 'scoped memory for tpu_custom_call.1']
    #allocation4 [shape = 's32[2]{0}', space=sflag, size = 0x8, scoped, tag = 'scoped memory for tpu_custom_call.1']
    #allocation5 [shape = 'u8[65536]{0}', space=vmem, size = 0x10000, scoped, tag = 'input window, operand 1']
    #allocation6 [shape = 's32[2]{0}', space=sflag, size = 0x8, scoped, tag = 'scoped memory for tpu_custom_call.1']
    #allocation7 [shape = 'u8[32768]{0}', space=vmem, size = 0x8000, scoped, tag = 'input window, operand 2, single buffered']
    #allocation8 [shape = 'u8[65536]{0}', space=vmem, size = 0x10000, scoped, tag = 'input window, operand 4, single buffered']
    #allocation9 [shape = 's32[1]{0}', space=sflag, size = 0x4, scoped, tag = 'scoped memory for tpu_custom_call.1']
    #allocation10 [shape = 'u8[65536]{0}', space=vmem, size = 0x10000, scoped, tag = 'output window, operand 0']
    #allocation11 [shape = 'u8[65536]{0}', space=vmem, size = 0x10000, scoped, tag = 'output window, operand 1']
    #allocation12 [shape = 's32[2]{0}', space=sflag, size = 0x8, scoped, tag = 'scoped memory for tpu_custom_call.1']
    #allocation13 [shape = 'u8[16384]{0}', space=vmem, size = 0x4000, scoped, tag = 'output window, operand 2']
    %14 = vsyncpa [#allocation3], 0
    %s15 = scalar_lea.sflag [#allocation3], 1
    %16 = vsyncpa %s15, 0
    %17 = vsyncpa [#allocation6], 0
    %s18 = scalar_lea.sflag [#allocation6], 1
    %19 = vsyncpa %s18, 0
    %20 = vsyncpa [#allocation9], 0
    %21 = vsyncpa [#allocation4], 0
    %s22 = scalar_lea.sflag [#allocation4], 1
    %23 = vsyncpa %s22, 0
    %24 = vsyncpa [#allocation12], 0
    %s25 = scalar_lea.sflag [#allocation12], 1
    %26 = vsyncpa %s25, 0
    loop: start=0, step=1, limit=4
    $region2: #{tpu_custom_call.1} parent=1 // loop_pre_header
      _
    $region3: #{tpu_custom_call.1} parent=1 // loop_header
      %s28 = sphi 0, %s32
      %p29 = scmp.ge.s32.totalorder %s28, 4
      %s38 = sphi 0, %s40
      %s41 = sphi 0, %s38
      %s42 = sphi 0, %s41
      %s58 = sphi 0, %s42
      %s64 = sphi 0, %s66
      %s67 = sphi 0, %s64
      %s68 = sphi 0, %s67
      %s84 = sphi 0, %s68
      %s88 = sphi 0, %s88
      %s90 = sphi 0, %s88
      %s91 = sphi 0, %s90
      %s105 = sphi 0, %s91
      %s109 = sphi 0, %s109
      %s111 = sphi 0, %s109
      %s112 = sphi 0, %s111
      %s126 = sphi 0, %s112
      %s130 = sphi 0, %s130
      %s132 = sphi 0, %s130
      %s133 = sphi 0, %s132
      %s147 = sphi 0, %s133
      %s151 = sphi 0, %s151
      %s153 = sphi 0, %s151
      %s154 = sphi 0, %s153
      %s168 = sphi 0, %s154
      %s174 = sphi 0, %s176
      %s177 = sphi 0, %s174
      %s178 = sphi 0, %s177
      %s194 = sphi 0, %s178
      %s200 = sphi 0, %s202
      %s203 = sphi 0, %s200
      %s204 = sphi 0, %s203
      %s220 = sphi 0, %s204
      %s226 = sphi 0, %s228
      %s229 = sphi 0, %s226
      %s230 = sphi 0, %s229
      %s246 = sphi 0, %s230
    $region4: #{tpu_custom_call.1} parent=1 // loop_header_branch
      %31 = sbr.rel (%p29) target = $region8
    $region5: #{tpu_custom_call.1} parent=1 // loop_body
      %s33 = ssub.s32 %s28, 1
      %s34 = ssub.s32 %s28, 2
      %s35 = sadd.s32 %s28, 1
      %s36 = ssub.s32 %s28, %s35
      %p37 = scmp.eq.s32.totalorder %s36, 0
      %s39 = sadd.s32 %s38, 1
      %s40 = scalar_select %p37, %s38, %s39
      %p43 = pneg %p37
      %p44 = scmp.eq.s32.totalorder %s28, 1
      %p45 = por %p43, %p44
      %p46 = scmp.ne.s32.totalorder %s38, %s41
      %p47 = scmp.eq.s32.totalorder %s28, 0
      %p48 = por %p46, %p47
      %p49 = scmp.ne.s32.totalorder %s38, %s41
      %p50 = scmp.eq.s32.totalorder %s33, 1
      %p51 = por %p49, %p50
      %p52 = scmp.ne.s32.totalorder %s41, %s42
      %p53 = scmp.eq.s32.totalorder %s33, 0
      %p54 = por %p52, %p53
      %p55 = scmp.ne.s32.totalorder %s41, %s42
      %p56 = scmp.eq.s32.totalorder %s34, 1
      %p57 = por %p55, %p56
      %p59 = scmp.ne.s32.totalorder %s42, %s58
      %p60 = scmp.eq.s32.totalorder %s34, 0
      %p61 = por %p59, %p60
      %s62 = ssub.s32 %s28, %s35
      %p63 = scmp.eq.s32.totalorder %s62, 0
      %s65 = sadd.s32 %s64, 1
      %s66 = scalar_select %p63, %s64, %s65
      %p69 = pneg %p63
      %p70 = scmp.eq.s32.totalorder %s28, 1
      %p71 = por %p69, %p70
      %p72 = scmp.ne.s32.totalorder %s64, %s67
      %p73 = scmp.eq.s32.totalorder %s28, 0
      %p74 = por %p72, %p73
      %p75 = scmp.ne.s32.totalorder %s64, %s67
      %p76 = scmp.eq.s32.totalorder %s33, 1
      %p77 = por %p75, %p76
      %p78 = scmp.ne.s32.totalorder %s67, %s68
      %p79 = scmp.eq.s32.totalorder %s33, 0
      %p80 = por %p78, %p79
      %p81 = scmp.ne.s32.totalorder %s67, %s68
      %p82 = scmp.eq.s32.totalorder %s34, 1
      %p83 = por %p81, %p82
      %p85 = scmp.ne.s32.totalorder %s68, %s84
      %p86 = scmp.eq.s32.totalorder %s34, 0
      %p87 = por %p85, %p86
      %s89 = sadd.s32 %s88, 1
      %p92 = scmp.eq.s32.totalorder %s28, 1
      %p93 = scmp.ne.s32.totalorder %s88, %s90
      %p94 = scmp.eq.s32.totalorder %s28, 0
      %p95 = por %p93, %p94
      %p96 = scmp.ne.s32.totalorder %s88, %s90
      %p97 = scmp.eq.s32.totalorder %s33, 1
      %p98 = por %p96, %p97
      %p99 = scmp.ne.s32.totalorder %s90, %s91
      %p100 = scmp.eq.s32.totalorder %s33, 0
      %p101 = por %p99, %p100
      %p102 = scmp.ne.s32.totalorder %s90, %s91
      %p103 = scmp.eq.s32.totalorder %s34, 1
      %p104 = por %p102, %p103
      %p106 = scmp.ne.s32.totalorder %s91, %s105
      %p107 = scmp.eq.s32.totalorder %s34, 0
      %p108 = por %p106, %p107
      %s110 = sadd.s32 %s109, 1
      %p113 = scmp.eq.s32.totalorder %s28, 1
      %p114 = scmp.ne.s32.totalorder %s109, %s111
      %p115 = scmp.eq.s32.totalorder %s28, 0
      %p116 = por %p114, %p115
      %p117 = scmp.ne.s32.totalorder %s109, %s111
      %p118 = scmp.eq.s32.totalorder %s33, 1
      %p119 = por %p117, %p118
      %p120 = scmp.ne.s32.totalorder %s111, %s112
      %p121 = scmp.eq.s32.totalorder %s33, 0
      %p122 = por %p120, %p121
      %p123 = scmp.ne.s32.totalorder %s111, %s112
      %p124 = scmp.eq.s32.totalorder %s34, 1
      %p125 = por %p123, %p124
      %p127 = scmp.ne.s32.totalorder %s112, %s126
      %p128 = scmp.eq.s32.totalorder %s34, 0
      %p129 = por %p127, %p128
      %s131 = sadd.s32 %s130, 1
      %p134 = scmp.eq.s32.totalorder %s28, 1
      %p135 = scmp.ne.s32.totalorder %s130, %s132
      %p136 = scmp.eq.s32.totalorder %s28, 0
      %p137 = por %p135, %p136
      %p138 = scmp.ne.s32.totalorder %s130, %s132
      %p139 = scmp.eq.s32.totalorder %s33, 1
      %p140 = por %p138, %p139
      %p141 = scmp.ne.s32.totalorder %s132, %s133
      %p142 = scmp.eq.s32.totalorder %s33, 0
      %p143 = por %p141, %p142
      %p144 = scmp.ne.s32.totalorder %s132, %s133
      %p145 = scmp.eq.s32.totalorder %s34, 1
      %p146 = por %p144, %p145
      %p148 = scmp.ne.s32.totalorder %s133, %s147
      %p149 = scmp.eq.s32.totalorder %s34, 0
      %p150 = por %p148, %p149
      %s152 = sadd.s32 %s151, 1
      %p155 = scmp.eq.s32.totalorder %s28, 1
      %p156 = scmp.ne.s32.totalorder %s151, %s153
      %p157 = scmp.eq.s32.totalorder %s28, 0
      %p158 = por %p156, %p157
      %p159 = scmp.ne.s32.totalorder %s151, %s153
      %p160 = scmp.eq.s32.totalorder %s33, 1
      %p161 = por %p159, %p160
      %p162 = scmp.ne.s32.totalorder %s153, %s154
      %p163 = scmp.eq.s32.totalorder %s33, 0
      %p164 = por %p162, %p163
      %p165 = scmp.ne.s32.totalorder %s153, %s154
      %p166 = scmp.eq.s32.totalorder %s34, 1
      %p167 = por %p165, %p166
      %p169 = scmp.ne.s32.totalorder %s154, %s168
      %p170 = scmp.eq.s32.totalorder %s34, 0
      %p171 = por %p169, %p170
      %s172 = ssub.s32 %s28, %s35
      %p173 = scmp.eq.s32.totalorder %s172, 0
      %s175 = sadd.s32 %s174, 1
      %s176 = scalar_select %p173, %s174, %s175
      %p179 = pneg %p173
      %p180 = scmp.eq.s32.totalorder %s28, 1
      %p181 = por %p179, %p180
      %p182 = scmp.ne.s32.totalorder %s174, %s177
      %p183 = scmp.eq.s32.totalorder %s28, 0
      %p184 = por %p182, %p183
      %p185 = scmp.ne.s32.totalorder %s174, %s177
      %p186 = scmp.eq.s32.totalorder %s33, 1
      %p187 = por %p185, %p186
      %p188 = scmp.ne.s32.totalorder %s177, %s178
      %p189 = scmp.eq.s32.totalorder %s33, 0
      %p190 = por %p188, %p189
      %p191 = scmp.ne.s32.totalorder %s177, %s178
      %p192 = scmp.eq.s32.totalorder %s34, 1
      %p193 = por %p191, %p192
      %p195 = scmp.ne.s32.totalorder %s178, %s194
      %p196 = scmp.eq.s32.totalorder %s34, 0
      %p197 = por %p195, %p196
      %s198 = ssub.s32 %s28, %s35
      %p199 = scmp.eq.s32.totalorder %s198, 0
      %s201 = sadd.s32 %s200, 1
      %s202 = scalar_select %p199, %s200, %s201
      %p205 = pneg %p199
      %p206 = scmp.eq.s32.totalorder %s28, 1
      %p207 = por %p205, %p206
      %p208 = scmp.ne.s32.totalorder %s200, %s203
      %p209 = scmp.eq.s32.totalorder %s28, 0
      %p210 = por %p208, %p209
      %p211 = scmp.ne.s32.totalorder %s200, %s203
      %p212 = scmp.eq.s32.totalorder %s33, 1
      %p213 = por %p211, %p212
      %p214 = scmp.ne.s32.totalorder %s203, %s204
      %p215 = scmp.eq.s32.totalorder %s33, 0
      %p216 = por %p214, %p215
      %p217 = scmp.ne.s32.totalorder %s203, %s204
      %p218 = scmp.eq.s32.totalorder %s34, 1
      %p219 = por %p217, %p218
      %p221 = scmp.ne.s32.totalorder %s204, %s220
      %p222 = scmp.eq.s32.totalorder %s34, 0
      %p223 = por %p221, %p222
      %s224 = ssub.s32 %s28, %s35
      %p225 = scmp.eq.s32.totalorder %s224, 0
      %s227 = sadd.s32 %s226, 1
      %s228 = scalar_select %p225, %s226, %s227
      %p231 = pneg %p225
      %p232 = scmp.eq.s32.totalorder %s28, 1
      %p233 = por %p231, %p232
      %p234 = scmp.ne.s32.totalorder %s226, %s229
      %p235 = scmp.eq.s32.totalorder %s28, 0
      %p236 = por %p234, %p235
      %p237 = scmp.ne.s32.totalorder %s226, %s229
      %p238 = scmp.eq.s32.totalorder %s33, 1
      %p239 = por %p237, %p238
      %p240 = scmp.ne.s32.totalorder %s229, %s230
      %p241 = scmp.eq.s32.totalorder %s33, 0
      %p242 = por %p240, %p241
      %p243 = scmp.ne.s32.totalorder %s229, %s230
      %p244 = scmp.eq.s32.totalorder %s34, 1
      %p245 = por %p243, %p244
      %p247 = scmp.ne.s32.totalorder %s230, %s246
      %p248 = scmp.eq.s32.totalorder %s34, 0
      %p249 = por %p247, %p248
      %p250 = scmp.le.s32.totalorder 1, %s28
      %p251 = scmp.lt.s32.totalorder %s28, 3
      %p252 = pnand %p250, %p251
      %p253 = pneg %p252
      // Predicated region
      $region9: #{tpu_custom_call.1} parent=5 // pred_check
        _
      $region10: #{tpu_custom_call.1} parent=5 // pred_check_branch
        %255 = sbr.rel (%p252) target = $region12
      $region11: #{tpu_custom_call.1} parent=5 // pred_region
        %s256 = ssub.s32 %s28, 1
        // Predicated region
        $region13: #{tpu_custom_call.1} parent=11 // pred_check
          %p257 = pneg %p101
        $region14: #{tpu_custom_call.1} parent=11 // pred_check_branch
          %259 = sbr.rel (%p257) target = $region16
        $region15: #{tpu_custom_call.1} parent=11 // pred_region
          %s261 = ssub.s32 1024, 1024
          %262 = vsyncadd [#allocation6], %s261
          %s263 = sshll.u32 [#allocation7], 4
          %s264 = int_to_ptr.vmem [resolvable:$true] %s263
          %269 = dma.hbm_to_vmem [thread:$0]  %s2, 1024, %s264, [#allocation6], 256, 256, 16
        $region16: #{tpu_custom_call.1} parent=11 // pred_fallthru
          _
        // Predicated region
        $region17: #{tpu_custom_call.1} parent=11 // pred_check
          %p270 = pneg %p122
        $region18: #{tpu_custom_call.1} parent=11 // pred_check_branch
          %272 = sbr.rel (%p270) target = $region20
        $region19: #{tpu_custom_call.1} parent=11 // pred_region
          _
        $region20: #{tpu_custom_call.1} parent=11 // pred_fallthru
          _
        // Predicated region
        $region21: #{tpu_custom_call.1} parent=11 // pred_check
          %p273 = pneg %p143
        $region22: #{tpu_custom_call.1} parent=11 // pred_check_branch
          %275 = sbr.rel (%p273) target = $region24
        $region23: #{tpu_custom_call.1} parent=11 // pred_region
          %s277 = ssub.s32 2048, 2048
          %278 = vsyncadd [#allocation9], %s277
          %s279 = sshll.u32 [#allocation8], 4
          %s280 = int_to_ptr.vmem [resolvable:$true] %s279
          %285 = dma.hbm_to_vmem [thread:$0]  %s4, 2048, %s280, [#allocation9], 128, 128, 8
        $region24: #{tpu_custom_call.1} parent=11 // pred_fallthru
          _
        // Predicated region
        $region25: #{tpu_custom_call.1} parent=11 // pred_check
          %p286 = pneg %p164
        $region26: #{tpu_custom_call.1} parent=11 // pred_check_branch
          %288 = sbr.rel (%p286) target = $region28
        $region27: #{tpu_custom_call.1} parent=11 // pred_region
          _
        $region28: #{tpu_custom_call.1} parent=11 // pred_fallthru
          _
      $region12: #{tpu_custom_call.1} parent=5 // pred_fallthru
        _
      %p289 = scmp.lt.s32.totalorder %s28, 2
      // Predicated region
      $region29: #{tpu_custom_call.1} parent=5 // pred_check
        %p290 = pneg %p289
      $region30: #{tpu_custom_call.1} parent=5 // pred_check_branch
        %292 = sbr.rel (%p290) target = $region32
      $region31: #{tpu_custom_call.1} parent=5 // pred_region
        // Predicated region
        $region33: #{tpu_custom_call.1} parent=31 // pred_check
          %p293 = pneg %p48
        $region34: #{tpu_custom_call.1} parent=31 // pred_check_branch
          %295 = sbr.rel (%p293) target = $region36
        $region35: #{tpu_custom_call.1} parent=31 // pred_region
          %s296 = sand.u32 %s38, 1
          %s297 = scalar_lea.sflag [#allocation3], %s296
          %s298 = sand.u32 %s38, 1
          %s299 = smul.addr %s298, 8
          %s300 = scalar_lea.vmem [#allocation2], %s299
          %s302 = ssub.s32 128, 128
          %303 = vsyncadd %s297, %s302
          %s304 = smul.addr %s28, 128
          %s305 = scalar_lea.hbm %s0, %s304
          %s307 = sshll.u32 %s300, 4
          %s308 = int_to_ptr.vmem [resolvable:$true] %s307
          %310 = dma.hbm_to_vmem [thread:$0]  %s305, 128, %s308, %s297
        $region36: #{tpu_custom_call.1} parent=31 // pred_fallthru
          _
        // Predicated region
        $region37: #{tpu_custom_call.1} parent=31 // pred_check
          %p311 = pneg %p74
        $region38: #{tpu_custom_call.1} parent=31 // pred_check_branch
          %313 = sbr.rel (%p311) target = $region40
        $region39: #{tpu_custom_call.1} parent=31 // pred_region
          %s314 = sand.u32 %s28, 1
          %s315 = scalar_lea.sflag [#allocation6], %s314
          %s316 = sand.u32 %s64, 1
          %s317 = smul.addr %s316, 64
          %s318 = scalar_lea.vmem [#allocation5], %s317
          %s319 = smul.u32 8, %s28
          %s321 = ssub.s32 1024, 1024
          %322 = vsyncadd %s315, %s321
          %s323 = smul.addr %s319, 128
          %s324 = scalar_lea.hbm %s1, %s323
          %s325 = sshll.u32 %s318, 4
          %s326 = int_to_ptr.vmem [resolvable:$true] %s325
          %331 = dma.hbm_to_vmem [thread:$0]  %s324, 1024, %s326, %s315, 128, 128, 8
        $region40: #{tpu_custom_call.1} parent=31 // pred_fallthru
          _
      $region32: #{tpu_custom_call.1} parent=5 // pred_fallthru
        _
      %p332 = scmp.le.s32.totalorder 1, %s28
      %p333 = scmp.lt.s32.totalorder %s28, 3
      %p334 = pnand %p332, %p333
      %p335 = pneg %p334
      // Predicated region
      $region41: #{tpu_custom_call.1} parent=5 // pred_check
        _
      $region42: #{tpu_custom_call.1} parent=5 // pred_check_branch
        %337 = sbr.rel (%p334) target = $region44
      $region43: #{tpu_custom_call.1} parent=5 // pred_region
        %s338 = ssub.s32 %s28, 1
        %s339 = sand.u32 %s41, 1
        %s340 = scalar_lea.sflag [#allocation3], %s339
        %s341 = sand.u32 %s41, 1
        %s342 = smul.addr %s341, 8
        %s343 = scalar_lea.vmem [#allocation2], %s342
        // Predicated region
        $region45: #{tpu_custom_call.1} parent=43 // pred_check
          %p344 = pneg %p54
        $region46: #{tpu_custom_call.1} parent=43 // pred_check_branch
          %346 = sbr.rel (%p344) target = $region48
        $region47: #{tpu_custom_call.1} parent=43 // pred_region
          %347 = dma.done %s340, 128
        $region48: #{tpu_custom_call.1} parent=43 // pred_fallthru
          _
        %s348 = sand.u32 %s33, 1
        %s349 = scalar_lea.sflag [#allocation6], %s348
        %s350 = sand.u32 %s67, 1
        %s351 = smul.addr %s350, 64
        %s352 = scalar_lea.vmem [#allocation5], %s351
        // Predicated region
        $region49: #{tpu_custom_call.1} parent=43 // pred_check
          %p353 = pneg %p80
        $region50: #{tpu_custom_call.1} parent=43 // pred_check_branch
          %355 = sbr.rel (%p353) target = $region52
        $region51: #{tpu_custom_call.1} parent=43 // pred_region
          %356 = dma.done %s349, 1024
        $region52: #{tpu_custom_call.1} parent=43 // pred_fallthru
          _
        // Predicated region
        $region53: #{tpu_custom_call.1} parent=43 // pred_check
          %p357 = pneg %p101
        $region54: #{tpu_custom_call.1} parent=43 // pred_check_branch
          %359 = sbr.rel (%p357) target = $region56
        $region55: #{tpu_custom_call.1} parent=43 // pred_region
          %360 = dma.done [#allocation6], 1024
        $region56: #{tpu_custom_call.1} parent=43 // pred_fallthru
          _
        // Predicated region
        $region57: #{tpu_custom_call.1} parent=43 // pred_check
          %p361 = pneg %p143
        $region58: #{tpu_custom_call.1} parent=43 // pred_check_branch
          %363 = sbr.rel (%p361) target = $region60
        $region59: #{tpu_custom_call.1} parent=43 // pred_region
          %364 = dma.done [#allocation9], 2048
        $region60: #{tpu_custom_call.1} parent=43 // pred_fallthru
          _
        %s365 = sand.u32 %s41, 1
        %s366 = scalar_lea.sflag [#allocation3], %s365
        %s367 = sand.u32 %s41, 1
        %s368 = smul.addr %s367, 8
        %s369 = scalar_lea.vmem [#allocation2], %s368
        %p370 = pneg %p54
        %p371 = pneg %p51
        %s372 = sand.u32 %s33, 1
        %s373 = scalar_lea.sflag [#allocation6], %s372
        %s374 = sand.u32 %s67, 1
        %s375 = smul.addr %s374, 64
        %s376 = scalar_lea.vmem [#allocation5], %s375
        %p377 = pneg %p80
        %p378 = pneg %p77
        %p379 = pneg %p101
        %p380 = pneg %p98
        %p381 = pneg %p122
        %p382 = pneg %p119
        %p383 = pneg %p143
        %p384 = pneg %p140
        %p385 = pneg %p164
        %p386 = pneg %p161
        %p387 = pneg %p190
        %p388 = pneg %p187
        %s389 = sand.u32 %s177, 1
        %s390 = scalar_lea.sflag [#allocation4], %s389
        %s391 = sand.u32 %s177, 1
        %s392 = smul.addr %s391, 64
        %s393 = scalar_lea.vmem [#allocation10], %s392
        %p394 = pneg %p216
        %p395 = pneg %p213
        %s396 = sand.u32 %s33, 1
        %s397 = scalar_lea.sflag [#allocation12], %s396
        %s398 = sand.u32 %s203, 1
        %s399 = smul.addr %s398, 64
        %s400 = scalar_lea.vmem [#allocation11], %s399
        %p401 = pneg %p242
        %p402 = pneg %p239
        %s403 = sand.u32 %s33, 1
        %s404 = scalar_lea.sflag [#allocation12], %s403
        %s405 = sand.u32 %s229, 1
        %s406 = smul.addr %s405, 16
        %s407 = scalar_lea.vmem [#allocation13], %s406
        %s408 = smul.u32 8, %s33
        %s409 = smul.u32 8, %s33
        %s410 = smul.u32 8, %s33
        %v411 = vld [vmem:[%s343] sm:$0xff]
        %v412 = vld [vmem:[#allocation7] sm:$0xff]
        %v413 = vld [vmem:[#allocation7 + $0x8] sm:$0xff]
        %v414 = vld [vmem:[#allocation7 + $0x10] sm:$0xff]
        %v415 = vld [vmem:[#allocation7 + $0x18] sm:$0xff]
        %v416 = vld [vmem:[#allocation7 + $0x20] sm:$0xff]
        %v417 = vld [vmem:[#allocation7 + $0x28] sm:$0xff]
        %v418 = vld [vmem:[#allocation7 + $0x30] sm:$0xff]
        %v419 = vld [vmem:[#allocation7 + $0x38] sm:$0xff]
        %v420 = vld [vmem:[%s3] sm:$0x3]
        %v422 = vlaneseq
        %v423 = vshrl.u32 %v422, 7
        %v424 = vsub.s32 0, %v423
        %v425 = vrot.slane %v420, %v424
        %v426 = vlaneseq
        %v427 = vshrl.u32 %v426, 7
        %v428 = vsub.s32 1, %v427
        %v429 = vrot.slane %v420, %v428
        %vm432 = vcmask 261120
        %v434 = vsel %vm432, %v411, 0
        %436 = vmatprep.subr.mxu0 0.0
        %437 = vmatpush1.msra.mxu0 0.0
        %438 = vmatprep.subr.mxu0 0.0
        %439 = vmatpush1.msra.mxu0 0.0
        %440 = vmatprep.subr.mxu0 0.0
        %441 = vmatpush1.msra.mxu0 0.0
        %442 = vmatprep.subr.mxu0 0.0
        %443 = vmatpush1.msra.mxu0 0.0
        %444 = vmatprep.subr.mxu0 0.0
        %445 = vmatpush1.msra.mxu0 0.0
        %446 = vmatprep.subr.mxu0 0.0
        %447 = vmatpush1.msra.mxu0 0.0
        %448 = vmatprep.subr.mxu0 0.0
        %449 = vmatpush1.msra.mxu0 0.0
        %450 = vmatprep.subr.mxu0 0.0
        %451 = vmatpush1.msra.mxu0 0.0
        %452 = vmatprep.subr.mxu0 0.0
        %453 = vmatpush1.msra.mxu0 0.0
        %454 = vmatprep.subr.mxu0 0.0
        %455 = vmatpush1.msra.mxu0 0.0
        %456 = vmatprep.subr.mxu0 0.0
        %457 = vmatpush1.msra.mxu0 0.0
        %458 = vmatprep.subr.mxu0 0.0
        %459 = vmatpush1.msra.mxu0 0.0
        %460 = vmatprep.subr.mxu0 %v419
        %461 = vmatpush1.msra.mxu0 %v418
        %462 = vmatprep.subr.mxu0 %v417
        %463 = vmatpush1.msra.mxu0 %v416
        %464 = vmatprep.subr.mxu0 %v415
        %465 = vmatpush1.msra.mxu0 %v414
        %466 = vmatprep.subr.mxu0 %v413
        %467 = vmatpush1.msra.mxu0 %v412
        %468 = vmatprep.subr.mxu0 0.0
        %469 = vmatpush2.msra.mxu0 0.0
        %470 = vmatprep.subr.mxu0 0.0
        %471 = vmatpush2.msra.mxu0 0.0
        %472 = vmatprep.subr.mxu0 0.0
        %473 = vmatpush2.msra.mxu0 0.0
        %474 = vmatprep.subr.mxu0 0.0
        %475 = vmatpush2.msra.mxu0 0.0
        %476 = vmatprep.subr.mxu0 0.0
        %477 = vmatpush2.msra.mxu0 0.0
        %478 = vmatprep.subr.mxu0 0.0
        %479 = vmatpush2.msra.mxu0 0.0
        %480 = vmatprep.subr.mxu0 0.0
        %481 = vmatpush2.msra.mxu0 0.0
        %482 = vmatprep.subr.mxu0 0.0
        %483 = vmatpush2.msra.mxu0 0.0
        %484 = vmatprep.subr.mxu0 0.0
        %485 = vmatpush2.msra.mxu0 0.0
        %486 = vmatprep.subr.mxu0 0.0
        %487 = vmatpush2.msra.mxu0 0.0
        %488 = vmatprep.subr.mxu0 0.0
        %489 = vmatpush2.msra.mxu0 0.0
        %490 = vmatprep.subr.mxu0 0.0
        %491 = vmatpush2.msra.mxu0 0.0
        %492 = vmatprep.subr.mxu0 0.0
        %493 = vmatpush2.msra.mxu0 0.0
        %494 = vmatprep.subr.mxu0 0.0
        %495 = vmatpush2.msra.mxu0 0.0
        %496 = vmatprep.subr.mxu0 0.0
        %497 = vmatpush2.msra.mxu0 0.0
        %498 = vmatprep.subr.mxu0 0.0
        %499 = vmatpush2.msra.mxu0 0.0
        %500 = vmatprep.mubr.f32.mxu0 0.0
        %501 = vmatmul.mubr.f32.gmra.mxu0 %v434
        %v502 = vpop.f32.mrf.mxu0
        %v503 = vadd.f32 %v425, %v502
        %v504 = vpop.f32.mrf.mxu0
        %v505 = vadd.f32 %v429, %v504
        %506 = vdwg.mxu0
        %v507 = vmul.f32 %v505, 1.442695
        %v508 = vpow.pop %v507
        %v509 = vld [vmem:[%s352] sm:$0xff]
        %v510 = vld [vmem:[%s352 + $0x8] sm:$0xff]
        %v511 = vld [vmem:[%s352 + $0x10] sm:$0xff]
        %v512 = vld [vmem:[%s352 + $0x18] sm:$0xff]
        %v513 = vld [vmem:[%s352 + $0x20] sm:$0xff]
        %v514 = vld [vmem:[%s352 + $0x28] sm:$0xff]
        %v515 = vld [vmem:[%s352 + $0x30] sm:$0xff]
        %v516 = vld [vmem:[%s352 + $0x38] sm:$0xff]
        %v517 = vmax.f32 %v509, -4.0
        %v518 = vmax.f32 %v510, -4.0
        %v519 = vmax.f32 %v511, -4.0
        %v520 = vmax.f32 %v512, -4.0
        %v521 = vmax.f32 %v513, -4.0
        %v522 = vmax.f32 %v514, -4.0
        %v523 = vmax.f32 %v515, -4.0
        %v524 = vmax.f32 %v516, -4.0
        %v525 = vmin.f32 %v517, 4.0
        %v526 = vmin.f32 %v518, 4.0
        %v527 = vmin.f32 %v519, 4.0
        %v528 = vmin.f32 %v520, 4.0
        %v529 = vmin.f32 %v521, 4.0
        %v530 = vmin.f32 %v522, 4.0
        %v531 = vmin.f32 %v523, 4.0
        %v532 = vmin.f32 %v524, 4.0
        %v534 = vcombine.high %v503, %v503
        %v536 = vunpack.c.l.s4 1966171168
        %v537 = vunpack.c.0.s8 %v536
        %v538 = vlaneseq
        %v539 = vshrl.u32 %v538, 7
        %v540 = vsub.s32 %v537, %v539
        %v541 = vrot.slane %v503, %v540
        %v543 = vunpack.c.l.s4 1966171168
        %v544 = vunpack.c.0.s8 %v543
        %v545 = vlaneseq
        %v546 = vshrl.u32 %v545, 7
        %v547 = vsub.s32 %v544, %v546
        %v548 = vrot.slane %v534, %v547
        %v549 = vcombine.high %v541, %v541
        %v550 = vcombine.high %v548, %v548
        %v552 = vunpack.c.l.s4 1966171168
        %v553 = vunpack.c.0.s8 %v552
        %v554 = vlaneseq
        %v555 = vshrl.u32 %v554, 7
        %v556 = vsub.s32 %v553, %v555
        %v557 = vrot.slane %v541, %v556
        %v559 = vunpack.c.l.s4 1966171168
        %v560 = vunpack.c.0.s8 %v559
        %v561 = vlaneseq
        %v562 = vshrl.u32 %v561, 7
        %v563 = vsub.s32 %v560, %v562
        %v564 = vrot.slane %v548, %v563
        %v566 = vunpack.c.l.s4 1966171168
        %v567 = vunpack.c.0.s8 %v566
        %v568 = vlaneseq
        %v569 = vshrl.u32 %v568, 7
        %v570 = vsub.s32 %v567, %v569
        %v571 = vrot.slane %v549, %v570
        %v573 = vunpack.c.l.s4 1966171168
        %v574 = vunpack.c.0.s8 %v573
        %v575 = vlaneseq
        %v576 = vshrl.u32 %v575, 7
        %v577 = vsub.s32 %v574, %v576
        %v578 = vrot.slane %v550, %v577
        %v579 = vcombine.high %v557, %v557
        %v580 = vcombine.high %v564, %v564
        %v581 = vcombine.high %v571, %v571
        %v582 = vcombine.high %v578, %v578
        %v584 = vcombine.high %v508, %v508
        %v586 = vunpack.c.l.s4 1966171168
        %v587 = vunpack.c.0.s8 %v586
        %v588 = vlaneseq
        %v589 = vshrl.u32 %v588, 7
        %v590 = vsub.s32 %v587, %v589
        %v591 = vrot.slane %v508, %v590
        %v593 = vunpack.c.l.s4 1966171168
        %v594 = vunpack.c.0.s8 %v593
        %v595 = vlaneseq
        %v596 = vshrl.u32 %v595, 7
        %v597 = vsub.s32 %v594, %v596
        %v598 = vrot.slane %v584, %v597
        %v599 = vcombine.high %v591, %v591
        %v600 = vcombine.high %v598, %v598
        %v602 = vunpack.c.l.s4 1966171168
        %v603 = vunpack.c.0.s8 %v602
        %v604 = vlaneseq
        %v605 = vshrl.u32 %v604, 7
        %v606 = vsub.s32 %v603, %v605
        %v607 = vrot.slane %v591, %v606
        %v609 = vunpack.c.l.s4 1966171168
        %v610 = vunpack.c.0.s8 %v609
        %v611 = vlaneseq
        %v612 = vshrl.u32 %v611, 7
        %v613 = vsub.s32 %v610, %v612
        %v614 = vrot.slane %v598, %v613
        %v616 = vunpack.c.l.s4 1966171168
        %v617 = vunpack.c.0.s8 %v616
        %v618 = vlaneseq
        %v619 = vshrl.u32 %v618, 7
        %v620 = vsub.s32 %v617, %v619
        %v621 = vrot.slane %v599, %v620
        %v623 = vunpack.c.l.s4 1966171168
        %v624 = vunpack.c.0.s8 %v623
        %v625 = vlaneseq
        %v626 = vshrl.u32 %v625, 7
        %v627 = vsub.s32 %v624, %v626
        %v628 = vrot.slane %v600, %v627
        %v629 = vcombine.high %v607, %v607
        %v630 = vcombine.high %v614, %v614
        %v631 = vcombine.high %v621, %v621
        %v632 = vcombine.high %v628, %v628
        %v633 = vlaneseq
        %v634 = vshrl.u32 %v633, 7
        %v635 = vsub.s32 0, %v634
        %v636 = vrot.slane %v607, %v635
        %v637 = vlaneseq
        %v638 = vshrl.u32 %v637, 7
        %v639 = vsub.s32 0, %v638
        %v640 = vrot.slane %v621, %v639
        %v641 = vlaneseq
        %v642 = vshrl.u32 %v641, 7
        %v643 = vsub.s32 0, %v642
        %v644 = vrot.slane %v629, %v643
        %v645 = vlaneseq
        %v646 = vshrl.u32 %v645, 7
        %v647 = vsub.s32 0, %v646
        %v648 = vrot.slane %v631, %v647
        %v649 = vlaneseq
        %v650 = vshrl.u32 %v649, 7
        %v651 = vsub.s32 0, %v650
        %v652 = vrot.slane %v614, %v651
        %v653 = vlaneseq
        %v654 = vshrl.u32 %v653, 7
        %v655 = vsub.s32 0, %v654
        %v656 = vrot.slane %v628, %v655
        %v657 = vlaneseq
        %v658 = vshrl.u32 %v657, 7
        %v659 = vsub.s32 0, %v658
        %v660 = vrot.slane %v630, %v659
        %v661 = vlaneseq
        %v662 = vshrl.u32 %v661, 7
        %v663 = vsub.s32 0, %v662
        %v664 = vrot.slane %v632, %v663
        %v673 = vmul.f32 %v636, %v525
        %v674 = vmul.f32 %v640, %v526
        %v675 = vmul.f32 %v644, %v527
        %v676 = vmul.f32 %v648, %v528
        %v677 = vmul.f32 %v652, %v529
        %v678 = vmul.f32 %v656, %v530
        %v679 = vmul.f32 %v660, %v531
        %v680 = vmul.f32 %v664, %v532
        %v681 = vlaneseq
        %v682 = vshrl.u32 %v681, 7
        %v683 = vsub.s32 0, %v682
        %v684 = vrot.slane %v557, %v683
        %v685 = vlaneseq
        %v686 = vshrl.u32 %v685, 7
        %v687 = vsub.s32 0, %v686
        %v688 = vrot.slane %v571, %v687
        %v689 = vlaneseq
        %v690 = vshrl.u32 %v689, 7
        %v691 = vsub.s32 0, %v690
        %v692 = vrot.slane %v579, %v691
        %v693 = vlaneseq
        %v694 = vshrl.u32 %v693, 7
        %v695 = vsub.s32 0, %v694
        %v696 = vrot.slane %v581, %v695
        %v697 = vlaneseq
        %v698 = vshrl.u32 %v697, 7
        %v699 = vsub.s32 0, %v698
        %v700 = vrot.slane %v564, %v699
        %v701 = vlaneseq
        %v702 = vshrl.u32 %v701, 7
        %v703 = vsub.s32 0, %v702
        %v704 = vrot.slane %v578, %v703
        %v705 = vlaneseq
        %v706 = vshrl.u32 %v705, 7
        %v707 = vsub.s32 0, %v706
        %v708 = vrot.slane %v580, %v707
        %v709 = vlaneseq
        %v710 = vshrl.u32 %v709, 7
        %v711 = vsub.s32 0, %v710
        %v712 = vrot.slane %v582, %v711
        %v721 = vadd.f32 %v684, %v673
        %v722 = vadd.f32 %v688, %v674
        %v723 = vadd.f32 %v692, %v675
        %v724 = vadd.f32 %v696, %v676
        %v725 = vadd.f32 %v700, %v677
        %v726 = vadd.f32 %v704, %v678
        %v727 = vadd.f32 %v708, %v679
        %v728 = vadd.f32 %v712, %v680
        %v729 = vld [vmem:[#allocation8] sm:$0xff]
        %v730 = vld [vmem:[#allocation8 + $0x8] sm:$0xff]
        %v731 = vld [vmem:[#allocation8 + $0x10] sm:$0xff]
        %v732 = vld [vmem:[#allocation8 + $0x18] sm:$0xff]
        %v733 = vld [vmem:[#allocation8 + $0x20] sm:$0xff]
        %v734 = vld [vmem:[#allocation8 + $0x28] sm:$0xff]
        %v735 = vld [vmem:[#allocation8 + $0x30] sm:$0xff]
        %v736 = vld [vmem:[#allocation8 + $0x38] sm:$0xff]
        %v737 = vld [vmem:[#allocation8 + $0x40] sm:$0xff]
        %v738 = vld [vmem:[#allocation8 + $0x48] sm:$0xff]
        %v739 = vld [vmem:[#allocation8 + $0x50] sm:$0xff]
        %v740 = vld [vmem:[#allocation8 + $0x58] sm:$0xff]
        %v741 = vld [vmem:[#allocation8 + $0x60] sm:$0xff]
        %v742 = vld [vmem:[#allocation8 + $0x68] sm:$0xff]
        %v743 = vld [vmem:[#allocation8 + $0x70] sm:$0xff]
        %v744 = vld [vmem:[#allocation8 + $0x78] sm:$0xff]
        %v745 = vld [vmem:[%s5] sm:$0x1]
        %v747 = vlaneseq
        %v748 = vshrl.u32 %v747, 7
        %v749 = vsub.s32 0, %v748
        %v750 = vrot.slane %v745, %v749
        %752 = vmatprep.subr.mxu0 0.0
        %753 = vmatpush1.msra.mxu0 %v744
        %754 = vmatprep.subr.mxu0 0.0
        %755 = vmatpush1.msra.mxu0 %v743
        %756 = vmatprep.subr.mxu0 0.0
        %757 = vmatpush1.msra.mxu0 %v742
        %758 = vmatprep.subr.mxu0 0.0
        %759 = vmatpush1.msra.mxu0 %v741
        %760 = vmatprep.subr.mxu0 0.0
        %761 = vmatpush1.msra.mxu0 %v740
        %762 = vmatprep.subr.mxu0 0.0
        %763 = vmatpush1.msra.mxu0 %v739
        %764 = vmatprep.subr.mxu0 0.0
        %765 = vmatpush1.msra.mxu0 %v738
        %766 = vmatprep.subr.mxu0 0.0
        %767 = vmatpush1.msra.mxu0 %v737
        %768 = vmatprep.subr.mxu0 0.0
        %769 = vmatpush1.msra.mxu0 %v736
        %770 = vmatprep.subr.mxu0 0.0
        %771 = vmatpush1.msra.mxu0 %v735
        %772 = vmatprep.subr.mxu0 0.0
        %773 = vmatpush1.msra.mxu0 %v734
        %774 = vmatprep.subr.mxu0 0.0
        %775 = vmatpush1.msra.mxu0 %v733
        %776 = vmatprep.subr.mxu0 0.0
        %777 = vmatpush1.msra.mxu0 %v732
        %778 = vmatprep.subr.mxu0 0.0
        %779 = vmatpush1.msra.mxu0 %v731
        %780 = vmatprep.subr.mxu0 0.0
        %781 = vmatpush1.msra.mxu0 %v730
        %782 = vmatprep.subr.mxu0 0.0
        %783 = vmatpush1.msra.mxu0 %v729
        %784 = vmatprep.subr.mxu0 0.0
        %785 = vmatpush2.msra.mxu0 0.0
        %786 = vmatprep.subr.mxu0 0.0
        %787 = vmatpush2.msra.mxu0 0.0
        %788 = vmatprep.subr.mxu0 0.0
        %789 = vmatpush2.msra.mxu0 0.0
        %790 = vmatprep.subr.mxu0 0.0
        %791 = vmatpush2.msra.mxu0 0.0
        %792 = vmatprep.subr.mxu0 0.0
        %793 = vmatpush2.msra.mxu0 0.0
        %794 = vmatprep.subr.mxu0 0.0
        %795 = vmatpush2.msra.mxu0 0.0
        %796 = vmatprep.subr.mxu0 0.0
        %797 = vmatpush2.msra.mxu0 0.0
        %798 = vmatprep.subr.mxu0 0.0
        %799 = vmatpush2.msra.mxu0 0.0
        %800 = vmatprep.subr.mxu0 0.0
        %801 = vmatpush2.msra.mxu0 0.0
        %802 = vmatprep.subr.mxu0 0.0
        %803 = vmatpush2.msra.mxu0 0.0
        %804 = vmatprep.subr.mxu0 0.0
        %805 = vmatpush2.msra.mxu0 0.0
        %806 = vmatprep.subr.mxu0 0.0
        %807 = vmatpush2.msra.mxu0 0.0
        %808 = vmatprep.subr.mxu0 0.0
        %809 = vmatpush2.msra.mxu0 0.0
        %810 = vmatprep.subr.mxu0 0.0
        %811 = vmatpush2.msra.mxu0 0.0
        %812 = vmatprep.subr.mxu0 0.0
        %813 = vmatpush2.msra.mxu0 0.0
        %814 = vmatprep.subr.mxu0 0.0
        %815 = vmatpush2.msra.mxu0 0.0
        %816 = vmatprep.mubr.f32.mxu0 0.0
        %817 = vmatmul.mubr.f32.gmra.mxu0 %v721
        %v818 = vpop.f32.mrf.mxu0
        %v819 = vadd.f32 %v750, %v818
        %v820 = vpop.f32.mrf.mxu0
        %821 = vmatprep.mubr.f32.mxu0 0.0
        %822 = vmatmul.mubr.f32.gmra.mxu0 %v722
        %v823 = vpop.f32.mrf.mxu0
        %v824 = vadd.f32 %v750, %v823
        %v825 = vpop.f32.mrf.mxu0
        %826 = vmatprep.mubr.f32.mxu0 0.0
        %827 = vmatmul.mubr.f32.gmra.mxu0 %v723
        %v828 = vpop.f32.mrf.mxu0
        %v829 = vadd.f32 %v750, %v828
        %v830 = vpop.f32.mrf.mxu0
        %831 = vmatprep.mubr.f32.mxu0 0.0
        %832 = vmatmul.mubr.f32.gmra.mxu0 %v724
        %v833 = vpop.f32.mrf.mxu0
        %v834 = vadd.f32 %v750, %v833
        %v835 = vpop.f32.mrf.mxu0
        %836 = vmatprep.mubr.f32.mxu0 0.0
        %837 = vmatmul.mubr.f32.gmra.mxu0 %v725
        %v838 = vpop.f32.mrf.mxu0
        %v839 = vadd.f32 %v750, %v838
        %v840 = vpop.f32.mrf.mxu0
        %841 = vmatprep.mubr.f32.mxu0 0.0
        %842 = vmatmul.mubr.f32.gmra.mxu0 %v726
        %v843 = vpop.f32.mrf.mxu0
        %v844 = vadd.f32 %v750, %v843
        %v845 = vpop.f32.mrf.mxu0
        %846 = vmatprep.mubr.f32.mxu0 0.0
        %847 = vmatmul.mubr.f32.gmra.mxu0 %v727
        %v848 = vpop.f32.mrf.mxu0
        %v849 = vadd.f32 %v750, %v848
        %v850 = vpop.f32.mrf.mxu0
        %851 = vmatprep.mubr.f32.mxu0 0.0
        %852 = vmatmul.mubr.f32.gmra.mxu0 %v728
        %v853 = vpop.f32.mrf.mxu0
        %v854 = vadd.f32 %v750, %v853
        %v855 = vpop.f32.mrf.mxu0
        %856 = vdwg.mxu0
        %857 = vst [vmem:[%s393] sm:$0xff] %v819
        %858 = vst [vmem:[%s393 + $0x8] sm:$0xff] %v824
        %859 = vst [vmem:[%s393 + $0x10] sm:$0xff] %v829
        %860 = vst [vmem:[%s393 + $0x18] sm:$0xff] %v834
        %861 = vst [vmem:[%s393 + $0x20] sm:$0xff] %v839
        %862 = vst [vmem:[%s393 + $0x28] sm:$0xff] %v844
        %863 = vst [vmem:[%s393 + $0x30] sm:$0xff] %v849
        %864 = vst [vmem:[%s393 + $0x38] sm:$0xff] %v854
        %865 = vst [vmem:[%s400] sm:$0xff] %v721
        %866 = vst [vmem:[%s400 + $0x8] sm:$0xff] %v722
        %867 = vst [vmem:[%s400 + $0x10] sm:$0xff] %v723
        %868 = vst [vmem:[%s400 + $0x18] sm:$0xff] %v724
        %869 = vst [vmem:[%s400 + $0x20] sm:$0xff] %v725
        %870 = vst [vmem:[%s400 + $0x28] sm:$0xff] %v726
        %871 = vst [vmem:[%s400 + $0x30] sm:$0xff] %v727
        %872 = vst [vmem:[%s400 + $0x38] sm:$0xff] %v728
        %873 = vst [vmem:[%s407] sm:$0xff] %v503
        %874 = vst [vmem:[%s407 + $0x8] sm:$0xff] %v508
        %s875 = sand.u32 %s177, 1
        %s876 = scalar_lea.sflag [#allocation4], %s875
        %s877 = sand.u32 %s177, 1
        %s878 = smul.addr %s877, 64
        %s879 = scalar_lea.vmem [#allocation10], %s878
        %s880 = sand.u32 %s33, 1
        %s881 = scalar_lea.sflag [#allocation12], %s880
        %s882 = sand.u32 %s203, 1
        %s883 = smul.addr %s882, 64
        %s884 = scalar_lea.vmem [#allocation11], %s883
        %s885 = sand.u32 %s33, 1
        %s886 = scalar_lea.sflag [#allocation12], %s885
        %s887 = sand.u32 %s229, 1
        %s888 = smul.addr %s887, 16
        %s889 = scalar_lea.vmem [#allocation13], %s888
        // Predicated region
        $region61: #{tpu_custom_call.1} parent=43 // pred_check
          %p890 = pneg %p187
        $region62: #{tpu_custom_call.1} parent=43 // pred_check_branch
          %892 = sbr.rel (%p890) target = $region64
        $region63: #{tpu_custom_call.1} parent=43 // pred_region
          %s893 = smul.u32 8, %s33
          %s895 = ssub.s32 1024, 1024
          %896 = vsyncadd %s876, %s895
          %s897 = smul.addr %s893, 128
          %s898 = scalar_lea.hbm %s6, %s897
          %s899 = sshll.u32 %s879, 4
          %s900 = int_to_ptr.vmem [resolvable:$true] %s899
          %905 = dma.vmem_to_hbm [thread:$0]  %s900, 1024, %s898, %s876, 128, 128, 8
        $region64: #{tpu_custom_call.1} parent=43 // pred_fallthru
          _
        // Predicated region
        $region65: #{tpu_custom_call.1} parent=43 // pred_check
          %p906 = pneg %p213
        $region66: #{tpu_custom_call.1} parent=43 // pred_check_branch
          %908 = sbr.rel (%p906) target = $region68
        $region67: #{tpu_custom_call.1} parent=43 // pred_region
          %s909 = smul.u32 8, %s33
          %s911 = ssub.s32 1024, 1024
          %912 = vsyncadd %s881, %s911
          %s913 = smul.addr %s909, 128
          %s914 = scalar_lea.hbm %s7, %s913
          %s915 = sshll.u32 %s884, 4
          %s916 = int_to_ptr.vmem [resolvable:$true] %s915
          %921 = dma.vmem_to_hbm [thread:$0]  %s916, 1024, %s914, %s881, 128, 128, 8
        $region68: #{tpu_custom_call.1} parent=43 // pred_fallthru
          _
        // Predicated region
        $region69: #{tpu_custom_call.1} parent=43 // pred_check
          %p922 = pneg %p239
        $region70: #{tpu_custom_call.1} parent=43 // pred_check_branch
          %924 = sbr.rel (%p922) target = $region72
        $region71: #{tpu_custom_call.1} parent=43 // pred_region
          %s926 = ssub.s32 256, 256
          %927 = vsyncadd %s886, %s926
          %s928 = smul.addr %s33, 2
          %s929 = smul.addr %s928, 128
          %s930 = scalar_lea.hbm %s8, %s929
          %s932 = sshll.u32 %s889, 4
          %s933 = int_to_ptr.vmem [resolvable:$true] %s932
          %935 = dma.vmem_to_hbm [thread:$0]  %s933, 256, %s930, %s886
        $region72: #{tpu_custom_call.1} parent=43 // pred_fallthru
          _
      $region44: #{tpu_custom_call.1} parent=5 // pred_fallthru
        _
      %p936 = scmp.le.s32.totalorder 2, %s28
      // Predicated region
      $region73: #{tpu_custom_call.1} parent=5 // pred_check
        %p937 = pneg %p936
      $region74: #{tpu_custom_call.1} parent=5 // pred_check_branch
        %939 = sbr.rel (%p937) target = $region76
      $region75: #{tpu_custom_call.1} parent=5 // pred_region
        %s940 = ssub.s32 %s28, 2
        // Predicated region
        $region77: #{tpu_custom_call.1} parent=75 // pred_check
          %p941 = pneg %p193
        $region78: #{tpu_custom_call.1} parent=75 // pred_check_branch
          %943 = sbr.rel (%p941) target = $region80
        $region79: #{tpu_custom_call.1} parent=75 // pred_region
          %s944 = sand.u32 %s178, 1
          %s945 = scalar_lea.sflag [#allocation4], %s944
          %s946 = sand.u32 %s178, 1
          %s947 = smul.addr %s946, 64
          %s948 = scalar_lea.vmem [#allocation10], %s947
          %949 = dma.done %s945, 1024
        $region80: #{tpu_custom_call.1} parent=75 // pred_fallthru
          _
        // Predicated region
        $region81: #{tpu_custom_call.1} parent=75 // pred_check
          %p950 = pneg %p219
        $region82: #{tpu_custom_call.1} parent=75 // pred_check_branch
          %952 = sbr.rel (%p950) target = $region84
        $region83: #{tpu_custom_call.1} parent=75 // pred_region
          %s953 = sand.u32 %s34, 1
          %s954 = scalar_lea.sflag [#allocation12], %s953
          %s955 = sand.u32 %s204, 1
          %s956 = smul.addr %s955, 64
          %s957 = scalar_lea.vmem [#allocation11], %s956
          %958 = dma.done %s954, 1024
        $region84: #{tpu_custom_call.1} parent=75 // pred_fallthru
          _
        // Predicated region
        $region85: #{tpu_custom_call.1} parent=75 // pred_check
          %p959 = pneg %p245
        $region86: #{tpu_custom_call.1} parent=75 // pred_check_branch
          %961 = sbr.rel (%p959) target = $region88
        $region87: #{tpu_custom_call.1} parent=75 // pred_region
          %s962 = sand.u32 %s34, 1
          %s963 = scalar_lea.sflag [#allocation12], %s962
          %s964 = sand.u32 %s230, 1
          %s965 = smul.addr %s964, 16
          %s966 = scalar_lea.vmem [#allocation13], %s965
          %967 = dma.done %s963, 256
        $region88: #{tpu_custom_call.1} parent=75 // pred_fallthru
          _
      $region76: #{tpu_custom_call.1} parent=5 // pred_fallthru
        _
    $region6: #{tpu_custom_call.1} parent=1 // loop_footer
      %s32 = sadd.s32 1, %s28
    $region7: #{tpu_custom_call.1} parent=1 // loop_footer_branch
      %27 = sbr.rel target = $region3
    $region8: #{tpu_custom_call.1} parent=1 // loop_exit
      _
    %968 = vsyncpa [#allocation3], 1
    %s969 = scalar_lea.sflag [#allocation3], 1
    %970 = vsyncpa %s969, 1
    %971 = vsyncpa [#allocation6], 1
    %s972 = scalar_lea.sflag [#allocation6], 1
    %973 = vsyncpa %s972, 1
    %974 = vsyncpa [#allocation9], 1
    %975 = vsyncpa [#allocation4], 1
    %s976 = scalar_lea.sflag [#allocation4], 1
    %977 = vsyncpa %s976, 1
    %978 = vsyncpa [#allocation12], 1
    %s979 = scalar_lea.sflag [#allocation12], 1
    %980 = vsyncpa %s979, 1

</llo_original>
